<compile_context>
chip_gen: v6e
topology: v6e:2x2x1
jax: 0.10.0
libtpu: 0.0.40
codegen_flags: <defaults>
</compile_context>

<pallas_src>
import functools
import math

import jax
import jax.numpy as jnp
from jax import lax
from jax.experimental import pallas as pl
from jax.experimental.pallas import tpu as pltpu


def kan_kernel(x_ref, p_ref, o_ref, *, unroll, bf16_sin):
    # x_ref: (TB, TL)    batch-row x lane tile
    # p_ref: (3K+1, TL)  packed params: rows [0,K)=a, [K,2K)=b, [2K,3K)=w, 3K=bias
    # o_ref: (TB, TL)    output tile
    x = x_ref[...].astype(jnp.float32)
    num_basis = (p_ref.shape[0] - 1) // 3

    # Seed the accumulator with the broadcast bias (saves an epilogue add).
    bias = p_ref[pl.ds(3 * num_basis, 1), :].astype(jnp.float32)   # (1, TL)
    acc0 = jnp.broadcast_to(bias, x.shape)                          # (TB, TL) f32

    def body(k, acc):
        ak = p_ref[pl.ds(k, 1), :].astype(jnp.float32)
        bk = p_ref[pl.ds(num_basis + k, 1), :].astype(jnp.float32)
        wk = p_ref[pl.ds(2 * num_basis + k, 1), :].astype(jnp.float32)
        arg = ak * x + bk
        if bf16_sin:
            # ~2x EUP throughput on v6e/v7x; do NOT enable on v5e (no bf16 EUP).
            s = jnp.sin(arg.astype(jnp.bfloat16)).astype(jnp.float32)
        else:
            s = jnp.sin(arg)
        # Plain VPU FMA + EUP sin; no (TB, K, TL) intermediate ever exists.
        return acc + wk * s

    acc = lax.fori_loop(0, num_basis, body, acc0, unroll=unroll)
    o_ref[...] = acc.astype(o_ref.dtype)


def _pick_lane_tile(lanes, num_basis):
    """Lane-axis tile: multiple of 128 dividing `lanes`.  Keeps the resident
    packed-param block (~(3K+1)*tile*4 B per buffer) VMEM-friendly on v7x."""
    if lanes % 128 != 0:
        return lanes                        # not lane-dense; take the full extent
    by_params = ((4 << 20) // ((3 * num_basis + 1) * 4)) // 128 * 128
    target = min(lanes, 4096, max(128, by_params))
    if target >= lanes:
        return lanes
    for t in range(target, 0, -128):
        if lanes % t == 0:
            return t
    return lanes


def _pick_tile_rows(rows, lane_tile):
    """Row-axis tile: ~4 MiB per x/out buffer (byte-based, no hard row cap)."""
    budget_rows = max(8, (4 << 20) // (lane_tile * 4))
    if budget_rows >= rows:
        return rows
    return max(8, (budget_rows // 8) * 8)


def kan_layer(x, weights, bias, a, b, *, tile_rows=None, lane_tile=None,
              lane_fold=None, vmem_limit_bytes=None, bf16_sin=False):
    """KANLayer forward.

    x:       (batch, hidden_dim)
    weights: (hidden_dim, num_basis)
    bias:    (hidden_dim,)
    a, b:    (hidden_dim, num_basis)
    returns: (batch, hidden_dim)
    """
    batch, hidden = x.shape
    num_basis = weights.shape[1]

    # ---- lane-density fold: fold g batch rows into the lane axis so the last
    # dim of every block is a multiple of 128 (dense vst, no masked stores).
    if lane_fold is None:
        if hidden % 128 != 0:
            g = 128 // math.gcd(hidden, 128)
            lane_fold = g if (batch % g == 0) else 1
        else:
            lane_fold = 1
    g = lane_fold
    assert batch % g == 0, "batch must be divisible by the lane-fold factor"
    rows = batch // g
    lanes = hidden * g

    x2 = x.reshape(rows, lanes)

    # Packed params: one (3K+1, lanes) slab -> one DMA instead of four.
    a_t = jnp.tile(a.T, (1, g)).astype(jnp.float32)         # (K, lanes)
    b_t = jnp.tile(b.T, (1, g)).astype(jnp.float32)         # (K, lanes)
    w_t = jnp.tile(weights.T, (1, g)).astype(jnp.float32)   # (K, lanes)
    bias2 = jnp.tile(bias.reshape(1, hidden), (1, g)).astype(jnp.float32)
    params = jnp.concatenate([a_t, b_t, w_t, bias2], axis=0)  # (3K+1, lanes)

    # ---- tiling
    if lane_tile is None:
        lane_tile = _pick_lane_tile(lanes, num_basis)
    assert lanes % lane_tile == 0, "lane_tile must divide the folded lane dim"
    n_lane_steps = lanes // lane_tile

    if tile_rows is None:
        tile_rows = _pick_tile_rows(rows, lane_tile)
        # Make sure the (parallel) grid has >=2 steps when the shape allows it
        # so both v7x TensorCores get work.
        if n_lane_steps * (-(-rows // tile_rows)) < 2 and rows >= 16:
            tile_rows = max(8, ((rows // 2) // 8) * 8)

    n_row_steps = -(-rows // tile_rows)
    padded_rows = n_row_steps * tile_rows
    if padded_rows != rows:
        # Pad awkward batch sizes instead of falling back to one giant tile.
        x2 = jnp.pad(x2, ((0, padded_rows - rows), (0, 0)))

    grid = (n_row_steps, n_lane_steps)

    # ---- explicit VMEM budget (default scoped limit is only 16 MiB on v5e).
    if vmem_limit_bytes is None:
        xo_bytes = 2 * 2 * tile_rows * lane_tile * 4         # double-buffered x + out
        p_bufs = 1 if n_lane_steps == 1 else 2
        p_bytes = p_bufs * (3 * num_basis + 1) * lane_tile * 4
        vmem_limit_bytes = int(min(max(xo_bytes + p_bytes + (2 << 20), 16 << 20),
                                   48 << 20))

    # Advisory cost: the kernel is transcendental (sin) bound.
    cost = pl.CostEstimate(
        flops=5 * batch * hidden * num_basis,
        transcendentals=batch * hidden * num_basis,
        bytes_accessed=4 * (2 * padded_rows * lanes
                            + n_row_steps * (3 * num_basis + 1) * lanes),
    )

    unroll = True if num_basis <= 8 else 8
    kernel_fn = functools.partial(kan_kernel, unroll=unroll, bf16_sin=bf16_sin)

    def make_call(param_pipeline_mode):
        param_kwargs = {}
        if param_pipeline_mode is not None:
            param_kwargs["pipeline_mode"] = param_pipeline_mode
        return pl.pallas_call(
            kernel_fn,
            out_shape=jax.ShapeDtypeStruct((padded_rows, lanes), x.dtype),
            grid_spec=pltpu.PrefetchScalarGridSpec(
                num_scalar_prefetch=0,
                grid=grid,
                in_specs=[
                    # TODO(synk): bump to pl.Buffered(3) for tiny K (HBM-bound regime).
                    pl.BlockSpec((tile_rows, lane_tile), lambda i, j: (i, j)),
                    pl.BlockSpec((3 * num_basis + 1, lane_tile),
                                 lambda i, j: (0, j), **param_kwargs),
                ],
                out_specs=pl.BlockSpec((tile_rows, lane_tile), lambda i, j: (i, j)),
            ),
            compiler_params=pltpu.CompilerParams(
                dimension_semantics=("parallel", "parallel"),
                vmem_limit_bytes=vmem_limit_bytes,
            ),
            cost_estimate=cost,
        )

    if n_lane_steps == 1:
        # Constant-index param block: single-buffer it (halves the resident
        # param footprint; matters on v7x's 64 MiB VMEM).  Fall back to the
        # default double-buffering if this compiler rejects Buffered(1).
        try:
            out2 = jax.block_until_ready(make_call(pl.Buffered(1))(x2, params))
        except Exception:  # compiler-version dependent; fallback is always valid
            out2 = make_call(None)(x2, params)
    else:
        out2 = make_call(None)(x2, params)

    return out2[:rows].reshape(batch, hidden)


def kan_reference(x, weights, bias, a, b):
    # Pure-JAX reference matching the PyTorch forward exactly.
    x_expanded = x[:, :, None]                                   # (B, H, 1)
    basis = jnp.sin(a[None, :, :] * x_expanded + b[None, :, :])  # (B, H, K)
    return jnp.sum(weights[None, :, :] * basis, axis=2) + bias   # (B, H)


if __name__ == "__main__":
    hidden_dim = 32
    num_basis = 8
    batch = 8

    key = jax.random.PRNGKey(0)
    k_x, k_w, k_a, k_b = jax.random.split(key, 4)

    # Deterministic parameter init (randn-like, zeros for bias), as in __init__.
    weights = jax.random.normal(k_w, (hidden_dim, num_basis), dtype=jnp.float32)
    bias = jnp.zeros((hidden_dim,), dtype=jnp.float32)
    a = jax.random.normal(k_a, (hidden_dim, num_basis), dtype=jnp.float32)
    b = jax.random.normal(k_b, (hidden_dim, num_basis), dtype=jnp.float32)

    x = jax.random.normal(k_x, (batch, hidden_dim), dtype=jnp.float32)

    out = kan_layer(x, weights, bias, a, b)
    out = jax.block_until_ready(out)

    ref = kan_reference(x, weights, bias, a, b)
    assert out.shape == (batch, hidden_dim)
    assert jnp.allclose(out, ref, atol=1e-5, rtol=1e-5), "mismatch vs reference"

    print("KERNEL_OK")
</pallas_src>

<mosaic_0001>
module attributes {stable_mosaic.version = 11 : i64} {
  func.func @kan_kernel(%arg0: i32, %arg1: i32, %arg2: memref<2x128xf32, #tpu.memory_space<vmem>>, %arg3: memref<25x128xf32, #tpu.memory_space<vmem>>, %arg4: memref<2x128xf32, #tpu.memory_space<vmem>>) attributes {dimension_semantics = [#tpu.dimension_semantics<parallel>, #tpu.dimension_semantics<parallel>], iteration_bounds = array<i64: 1, 1>, scalar_prefetch = 0 : i64, scratch_operands = 0 : i64, tpu.core_type = #tpu.core_type<tc>, window_params = [{transform_indices = @transform_0, window_bounds = array<i64: 2, 128>}, {pipeline_mode = #tpu.pipeline_mode<synchronous>, transform_indices = @transform_1, window_bounds = array<i64: 25, 128>}, {transform_indices = @transform_2, window_bounds = array<i64: 2, 128>}]} {
    %c0 = arith.constant 0 : index
    %c0_0 = arith.constant 0 : index
    %0 = vector.load %arg2[%c0, %c0_0] : memref<2x128xf32, #tpu.memory_space<vmem>>, vector<2x128xf32>
    %c24 = arith.constant 24 : index
    %c0_1 = arith.constant 0 : index
    %1 = vector.load %arg3[%c24, %c0_1] : memref<25x128xf32, #tpu.memory_space<vmem>>, vector<1x128xf32>
    %2 = vector.shape_cast %1 : vector<1x128xf32> to vector<1x128xf32>
    %3 = vector.broadcast %2 : vector<1x128xf32> to vector<2x128xf32>
    %c0_i32 = arith.constant 0 : i32
    %4 = arith.index_cast %c0_i32 : i32 to index
    %c0_2 = arith.constant 0 : index
    %5 = vector.load %arg3[%4, %c0_2] : memref<25x128xf32, #tpu.memory_space<vmem>>, vector<1x128xf32>
    %c8_i32 = arith.constant 8 : i32
    %6 = arith.addi %c8_i32, %c0_i32 : i32
    %7 = arith.index_cast %6 : i32 to index
    %c0_3 = arith.constant 0 : index
    %8 = vector.load %arg3[%7, %c0_3] : memref<25x128xf32, #tpu.memory_space<vmem>>, vector<1x128xf32>
    %c16_i32 = arith.constant 16 : i32
    %9 = arith.addi %c16_i32, %c0_i32 : i32
    %10 = arith.index_cast %9 : i32 to index
    %c0_4 = arith.constant 0 : index
    %11 = vector.load %arg3[%10, %c0_4] : memref<25x128xf32, #tpu.memory_space<vmem>>, vector<1x128xf32>
    %12 = vector.broadcast %5 : vector<1x128xf32> to vector<2x128xf32>
    %13 = arith.mulf %12, %0 : vector<2x128xf32>
    %14 = vector.broadcast %8 : vector<1x128xf32> to vector<2x128xf32>
    %15 = arith.addf %13, %14 : vector<2x128xf32>
    %16 = math.sin %15 : vector<2x128xf32>
    %17 = vector.broadcast %11 : vector<1x128xf32> to vector<2x128xf32>
    %18 = arith.mulf %17, %16 : vector<2x128xf32>
    %19 = arith.addf %3, %18 : vector<2x128xf32>
    %c1_i32 = arith.constant 1 : i32
    %20 = arith.index_cast %c1_i32 : i32 to index
    %c0_5 = arith.constant 0 : index
    %21 = vector.load %arg3[%20, %c0_5] : memref<25x128xf32, #tpu.memory_space<vmem>>, vector<1x128xf32>
    %c8_i32_6 = arith.constant 8 : i32
    %22 = arith.addi %c8_i32_6, %c1_i32 : i32
    %23 = arith.index_cast %22 : i32 to index
    %c0_7 = arith.constant 0 : index
    %24 = vector.load %arg3[%23, %c0_7] : memref<25x128xf32, #tpu.memory_space<vmem>>, vector<1x128xf32>
    %c16_i32_8 = arith.constant 16 : i32
    %25 = arith.addi %c16_i32_8, %c1_i32 : i32
    %26 = arith.index_cast %25 : i32 to index
    %c0_9 = arith.constant 0 : index
    %27 = vector.load %arg3[%26, %c0_9] : memref<25x128xf32, #tpu.memory_space<vmem>>, vector<1x128xf32>
    %28 = vector.broadcast %21 : vector<1x128xf32> to vector<2x128xf32>
    %29 = arith.mulf %28, %0 : vector<2x128xf32>
    %30 = vector.broadcast %24 : vector<1x128xf32> to vector<2x128xf32>
    %31 = arith.addf %29, %30 : vector<2x128xf32>
    %32 = math.sin %31 : vector<2x128xf32>
    %33 = vector.broadcast %27 : vector<1x128xf32> to vector<2x128xf32>
    %34 = arith.mulf %33, %32 : vector<2x128xf32>
    %35 = arith.addf %19, %34 : vector<2x128xf32>
    %c2_i32 = arith.constant 2 : i32
    %36 = arith.index_cast %c2_i32 : i32 to index
    %c0_10 = arith.constant 0 : index
    %37 = vector.load %arg3[%36, %c0_10] : memref<25x128xf32, #tpu.memory_space<vmem>>, vector<1x128xf32>
    %c8_i32_11 = arith.constant 8 : i32
    %38 = arith.addi %c8_i32_11, %c2_i32 : i32
    %39 = arith.index_cast %38 : i32 to index
    %c0_12 = arith.constant 0 : index
    %40 = vector.load %arg3[%39, %c0_12] : memref<25x128xf32, #tpu.memory_space<vmem>>, vector<1x128xf32>
    %c16_i32_13 = arith.constant 16 : i32
    %41 = arith.addi %c16_i32_13, %c2_i32 : i32
    %42 = arith.index_cast %41 : i32 to index
    %c0_14 = arith.constant 0 : index
    %43 = vector.load %arg3[%42, %c0_14] : memref<25x128xf32, #tpu.memory_space<vmem>>, vector<1x128xf32>
    %44 = vector.broadcast %37 : vector<1x128xf32> to vector<2x128xf32>
    %45 = arith.mulf %44, %0 : vector<2x128xf32>
    %46 = vector.broadcast %40 : vector<1x128xf32> to vector<2x128xf32>
    %47 = arith.addf %45, %46 : vector<2x128xf32>
    %48 = math.sin %47 : vector<2x128xf32>
    %49 = vector.broadcast %43 : vector<1x128xf32> to vector<2x128xf32>
    %50 = arith.mulf %49, %48 : vector<2x128xf32>
    %51 = arith.addf %35, %50 : vector<2x128xf32>
    %c3_i32 = arith.constant 3 : i32
    %52 = arith.index_cast %c3_i32 : i32 to index
    %c0_15 = arith.constant 0 : index
    %53 = vector.load %arg3[%52, %c0_15] : memref<25x128xf32, #tpu.memory_space<vmem>>, vector<1x128xf32>
    %c8_i32_16 = arith.constant 8 : i32
    %54 = arith.addi %c8_i32_16, %c3_i32 : i32
    %55 = arith.index_cast %54 : i32 to index
    %c0_17 = arith.constant 0 : index
    %56 = vector.load %arg3[%55, %c0_17] : memref<25x128xf32, #tpu.memory_space<vmem>>, vector<1x128xf32>
    %c16_i32_18 = arith.constant 16 : i32
    %57 = arith.addi %c16_i32_18, %c3_i32 : i32
    %58 = arith.index_cast %57 : i32 to index
    %c0_19 = arith.constant 0 : index
    %59 = vector.load %arg3[%58, %c0_19] : memref<25x128xf32, #tpu.memory_space<vmem>>, vector<1x128xf32>
    %60 = vector.broadcast %53 : vector<1x128xf32> to vector<2x128xf32>
    %61 = arith.mulf %60, %0 : vector<2x128xf32>
    %62 = vector.broadcast %56 : vector<1x128xf32> to vector<2x128xf32>
    %63 = arith.addf %61, %62 : vector<2x128xf32>
    %64 = math.sin %63 : vector<2x128xf32>
    %65 = vector.broadcast %59 : vector<1x128xf32> to vector<2x128xf32>
    %66 = arith.mulf %65, %64 : vector<2x128xf32>
    %67 = arith.addf %51, %66 : vector<2x128xf32>
    %c4_i32 = arith.constant 4 : i32
    %68 = arith.index_cast %c4_i32 : i32 to index
    %c0_20 = arith.constant 0 : index
    %69 = vector.load %arg3[%68, %c0_20] : memref<25x128xf32, #tpu.memory_space<vmem>>, vector<1x128xf32>
    %c8_i32_21 = arith.constant 8 : i32
    %70 = arith.addi %c8_i32_21, %c4_i32 : i32
    %71 = arith.index_cast %70 : i32 to index
    %c0_22 = arith.constant 0 : index
    %72 = vector.load %arg3[%71, %c0_22] : memref<25x128xf32, #tpu.memory_space<vmem>>, vector<1x128xf32>
    %c16_i32_23 = arith.constant 16 : i32
    %73 = arith.addi %c16_i32_23, %c4_i32 : i32
    %74 = arith.index_cast %73 : i32 to index
    %c0_24 = arith.constant 0 : index
    %75 = vector.load %arg3[%74, %c0_24] : memref<25x128xf32, #tpu.memory_space<vmem>>, vector<1x128xf32>
    %76 = vector.broadcast %69 : vector<1x128xf32> to vector<2x128xf32>
    %77 = arith.mulf %76, %0 : vector<2x128xf32>
    %78 = vector.broadcast %72 : vector<1x128xf32> to vector<2x128xf32>
    %79 = arith.addf %77, %78 : vector<2x128xf32>
    %80 = math.sin %79 : vector<2x128xf32>
    %81 = vector.broadcast %75 : vector<1x128xf32> to vector<2x128xf32>
    %82 = arith.mulf %81, %80 : vector<2x128xf32>
    %83 = arith.addf %67, %82 : vector<2x128xf32>
    %c5_i32 = arith.constant 5 : i32
    %84 = arith.index_cast %c5_i32 : i32 to index
    %c0_25 = arith.constant 0 : index
    %85 = vector.load %arg3[%84, %c0_25] : memref<25x128xf32, #tpu.memory_space<vmem>>, vector<1x128xf32>
    %c8_i32_26 = arith.constant 8 : i32
    %86 = arith.addi %c8_i32_26, %c5_i32 : i32
    %87 = arith.index_cast %86 : i32 to index
    %c0_27 = arith.constant 0 : index
    %88 = vector.load %arg3[%87, %c0_27] : memref<25x128xf32, #tpu.memory_space<vmem>>, vector<1x128xf32>
    %c16_i32_28 = arith.constant 16 : i32
    %89 = arith.addi %c16_i32_28, %c5_i32 : i32
    %90 = arith.index_cast %89 : i32 to index
    %c0_29 = arith.constant 0 : index
    %91 = vector.load %arg3[%90, %c0_29] : memref<25x128xf32, #tpu.memory_space<vmem>>, vector<1x128xf32>
    %92 = vector.broadcast %85 : vector<1x128xf32> to vector<2x128xf32>
    %93 = arith.mulf %92, %0 : vector<2x128xf32>
    %94 = vector.broadcast %88 : vector<1x128xf32> to vector<2x128xf32>
    %95 = arith.addf %93, %94 : vector<2x128xf32>
    %96 = math.sin %95 : vector<2x128xf32>
    %97 = vector.broadcast %91 : vector<1x128xf32> to vector<2x128xf32>
    %98 = arith.mulf %97, %96 : vector<2x128xf32>
    %99 = arith.addf %83, %98 : vector<2x128xf32>
    %c6_i32 = arith.constant 6 : i32
    %100 = arith.index_cast %c6_i32 : i32 to index
    %c0_30 = arith.constant 0 : index
    %101 = vector.load %arg3[%100, %c0_30] : memref<25x128xf32, #tpu.memory_space<vmem>>, vector<1x128xf32>
    %c8_i32_31 = arith.constant 8 : i32
    %102 = arith.addi %c8_i32_31, %c6_i32 : i32
    %103 = arith.index_cast %102 : i32 to index
    %c0_32 = arith.constant 0 : index
    %104 = vector.load %arg3[%103, %c0_32] : memref<25x128xf32, #tpu.memory_space<vmem>>, vector<1x128xf32>
    %c16_i32_33 = arith.constant 16 : i32
    %105 = arith.addi %c16_i32_33, %c6_i32 : i32
    %106 = arith.index_cast %105 : i32 to index
    %c0_34 = arith.constant 0 : index
    %107 = vector.load %arg3[%106, %c0_34] : memref<25x128xf32, #tpu.memory_space<vmem>>, vector<1x128xf32>
    %108 = vector.broadcast %101 : vector<1x128xf32> to vector<2x128xf32>
    %109 = arith.mulf %108, %0 : vector<2x128xf32>
    %110 = vector.broadcast %104 : vector<1x128xf32> to vector<2x128xf32>
    %111 = arith.addf %109, %110 : vector<2x128xf32>
    %112 = math.sin %111 : vector<2x128xf32>
    %113 = vector.broadcast %107 : vector<1x128xf32> to vector<2x128xf32>
    %114 = arith.mulf %113, %112 : vector<2x128xf32>
    %115 = arith.addf %99, %114 : vector<2x128xf32>
    %c7_i32 = arith.constant 7 : i32
    %116 = arith.index_cast %c7_i32 : i32 to index
    %c0_35 = arith.constant 0 : index
    %117 = vector.load %arg3[%116, %c0_35] : memref<25x128xf32, #tpu.memory_space<vmem>>, vector<1x128xf32>
    %c8_i32_36 = arith.constant 8 : i32
    %118 = arith.addi %c8_i32_36, %c7_i32 : i32
    %119 = arith.index_cast %118 : i32 to index
    %c0_37 = arith.constant 0 : index
    %120 = vector.load %arg3[%119, %c0_37] : memref<25x128xf32, #tpu.memory_space<vmem>>, vector<1x128xf32>
    %c16_i32_38 = arith.constant 16 : i32
    %121 = arith.addi %c16_i32_38, %c7_i32 : i32
    %122 = arith.index_cast %121 : i32 to index
    %c0_39 = arith.constant 0 : index
    %123 = vector.load %arg3[%122, %c0_39] : memref<25x128xf32, #tpu.memory_space<vmem>>, vector<1x128xf32>
    %124 = vector.broadcast %117 : vector<1x128xf32> to vector<2x128xf32>
    %125 = arith.mulf %124, %0 : vector<2x128xf32>
    %126 = vector.broadcast %120 : vector<1x128xf32> to vector<2x128xf32>
    %127 = arith.addf %125, %126 : vector<2x128xf32>
    %128 = math.sin %127 : vector<2x128xf32>
    %129 = vector.broadcast %123 : vector<1x128xf32> to vector<2x128xf32>
    %130 = arith.mulf %129, %128 : vector<2x128xf32>
    %131 = arith.addf %115, %130 : vector<2x128xf32>
    %c8_i32_40 = arith.constant 8 : i32
    %c0_41 = arith.constant 0 : index
    %c0_42 = arith.constant 0 : index
    %132 = vector.load %arg4[%c0_41, %c0_42] : memref<2x128xf32, #tpu.memory_space<vmem>>, vector<2x128xf32>
    tpu.vector_store %arg4[%c0_41, %c0_42], %131 {strides = array<i32>} : memref<2x128xf32, #tpu.memory_space<vmem>>, vector<2x128xf32>,
    return
  }
  func.func @transform_0(%arg0: i32, %arg1: i32) -> (i32, i32) {
    %c0_i32 = arith.constant 0 : i32
    return %arg0, %arg1 : i32, i32
  }
  func.func @transform_1(%arg0: i32, %arg1: i32) -> (i32, i32) {
    %c0_i32 = arith.constant 0 : i32
    %c0_i32_0 = arith.constant 0 : i32
    return %c0_i32, %arg1 : i32, i32
  }
  func.func @transform_2(%arg0: i32, %arg1: i32) -> (i32, i32) {
    %c0_i32 = arith.constant 0 : i32
    return %arg0, %arg1 : i32, i32
  }
}

module attributes {stable_mosaic.version = 11 : i64} {
  func.func @kan_kernel(%arg0: i32, %arg1: i32, %arg2: memref<2x128xf32, #tpu.memory_space<vmem>>, %arg3: memref<25x128xf32, #tpu.memory_space<vmem>>, %arg4: memref<2x128xf32, #tpu.memory_space<vmem>>) attributes {dimension_semantics = [#tpu.dimension_semantics<parallel>, #tpu.dimension_semantics<parallel>], iteration_bounds = array<i64: 1, 1>, scalar_prefetch = 0 : i64, scratch_operands = 0 : i64, tpu.core_type = #tpu.core_type<tc>, window_params = [{transform_indices = @transform_0, window_bounds = array<i64: 2, 128>}, {transform_indices = @transform_1, window_bounds = array<i64: 25, 128>}, {transform_indices = @transform_2, window_bounds = array<i64: 2, 128>}]} {
    %c0 = arith.constant 0 : index
    %c0_0 = arith.constant 0 : index
    %0 = vector.load %arg2[%c0, %c0_0] : memref<2x128xf32, #tpu.memory_space<vmem>>, vector<2x128xf32>
    %c24 = arith.constant 24 : index
    %c0_1 = arith.constant 0 : index
    %1 = vector.load %arg3[%c24, %c0_1] : memref<25x128xf32, #tpu.memory_space<vmem>>, vector<1x128xf32>
    %2 = vector.shape_cast %1 : vector<1x128xf32> to vector<1x128xf32>
    %3 = vector.broadcast %2 : vector<1x128xf32> to vector<2x128xf32>
    %c0_i32 = arith.constant 0 : i32
    %4 = arith.index_cast %c0_i32 : i32 to index
    %c0_2 = arith.constant 0 : index
    %5 = vector.load %arg3[%4, %c0_2] : memref<25x128xf32, #tpu.memory_space<vmem>>, vector<1x128xf32>
    %c8_i32 = arith.constant 8 : i32
    %6 = arith.addi %c8_i32, %c0_i32 : i32
    %7 = arith.index_cast %6 : i32 to index
    %c0_3 = arith.constant 0 : index
    %8 = vector.load %arg3[%7, %c0_3] : memref<25x128xf32, #tpu.memory_space<vmem>>, vector<1x128xf32>
    %c16_i32 = arith.constant 16 : i32
    %9 = arith.addi %c16_i32, %c0_i32 : i32
    %10 = arith.index_cast %9 : i32 to index
    %c0_4 = arith.constant 0 : index
    %11 = vector.load %arg3[%10, %c0_4] : memref<25x128xf32, #tpu.memory_space<vmem>>, vector<1x128xf32>
    %12 = vector.broadcast %5 : vector<1x128xf32> to vector<2x128xf32>
    %13 = arith.mulf %12, %0 : vector<2x128xf32>
    %14 = vector.broadcast %8 : vector<1x128xf32> to vector<2x128xf32>
    %15 = arith.addf %13, %14 : vector<2x128xf32>
    %16 = math.sin %15 : vector<2x128xf32>
    %17 = vector.broadcast %11 : vector<1x128xf32> to vector<2x128xf32>
    %18 = arith.mulf %17, %16 : vector<2x128xf32>
    %19 = arith.addf %3, %18 : vector<2x128xf32>
    %c1_i32 = arith.constant 1 : i32
    %20 = arith.index_cast %c1_i32 : i32 to index
    %c0_5 = arith.constant 0 : index
    %21 = vector.load %arg3[%20, %c0_5] : memref<25x128xf32, #tpu.memory_space<vmem>>, vector<1x128xf32>
    %c8_i32_6 = arith.constant 8 : i32
    %22 = arith.addi %c8_i32_6, %c1_i32 : i32
    %23 = arith.index_cast %22 : i32 to index
    %c0_7 = arith.constant 0 : index
    %24 = vector.load %arg3[%23, %c0_7] : memref<25x128xf32, #tpu.memory_space<vmem>>, vector<1x128xf32>
    %c16_i32_8 = arith.constant 16 : i32
    %25 = arith.addi %c16_i32_8, %c1_i32 : i32
    %26 = arith.index_cast %25 : i32 to index
    %c0_9 = arith.constant 0 : index
    %27 = vector.load %arg3[%26, %c0_9] : memref<25x128xf32, #tpu.memory_space<vmem>>, vector<1x128xf32>
    %28 = vector.broadcast %21 : vector<1x128xf32> to vector<2x128xf32>
    %29 = arith.mulf %28, %0 : vector<2x128xf32>
    %30 = vector.broadcast %24 : vector<1x128xf32> to vector<2x128xf32>
    %31 = arith.addf %29, %30 : vector<2x128xf32>
    %32 = math.sin %31 : vector<2x128xf32>
    %33 = vector.broadcast %27 : vector<1x128xf32> to vector<2x128xf32>
    %34 = arith.mulf %33, %32 : vector<2x128xf32>
    %35 = arith.addf %19, %34 : vector<2x128xf32>
    %c2_i32 = arith.constant 2 : i32
    %36 = arith.index_cast %c2_i32 : i32 to index
    %c0_10 = arith.constant 0 : index
    %37 = vector.load %arg3[%36, %c0_10] : memref<25x128xf32, #tpu.memory_space<vmem>>, vector<1x128xf32>
    %c8_i32_11 = arith.constant 8 : i32
    %38 = arith.addi %c8_i32_11, %c2_i32 : i32
    %39 = arith.index_cast %38 : i32 to index
    %c0_12 = arith.constant 0 : index
    %40 = vector.load %arg3[%39, %c0_12] : memref<25x128xf32, #tpu.memory_space<vmem>>, vector<1x128xf32>
    %c16_i32_13 = arith.constant 16 : i32
    %41 = arith.addi %c16_i32_13, %c2_i32 : i32
    %42 = arith.index_cast %41 : i32 to index
    %c0_14 = arith.constant 0 : index
    %43 = vector.load %arg3[%42, %c0_14] : memref<25x128xf32, #tpu.memory_space<vmem>>, vector<1x128xf32>
    %44 = vector.broadcast %37 : vector<1x128xf32> to vector<2x128xf32>
    %45 = arith.mulf %44, %0 : vector<2x128xf32>
    %46 = vector.broadcast %40 : vector<1x128xf32> to vector<2x128xf32>
    %47 = arith.addf %45, %46 : vector<2x128xf32>
    %48 = math.sin %47 : vector<2x128xf32>
    %49 = vector.broadcast %43 : vector<1x128xf32> to vector<2x128xf32>
    %50 = arith.mulf %49, %48 : vector<2x128xf32>
    %51 = arith.addf %35, %50 : vector<2x128xf32>
    %c3_i32 = arith.constant 3 : i32
    %52 = arith.index_cast %c3_i32 : i32 to index
    %c0_15 = arith.constant 0 : index
    %53 = vector.load %arg3[%52, %c0_15] : memref<25x128xf32, #tpu.memory_space<vmem>>, vector<1x128xf32>
    %c8_i32_16 = arith.constant 8 : i32
    %54 = arith.addi %c8_i32_16, %c3_i32 : i32
    %55 = arith.index_cast %54 : i32 to index
    %c0_17 = arith.constant 0 : index
    %56 = vector.load %arg3[%55, %c0_17] : memref<25x128xf32, #tpu.memory_space<vmem>>, vector<1x128xf32>
    %c16_i32_18 = arith.constant 16 : i32
    %57 = arith.addi %c16_i32_18, %c3_i32 : i32
    %58 = arith.index_cast %57 : i32 to index
    %c0_19 = arith.constant 0 : index
    %59 = vector.load %arg3[%58, %c0_19] : memref<25x128xf32, #tpu.memory_space<vmem>>, vector<1x128xf32>
    %60 = vector.broadcast %53 : vector<1x128xf32> to vector<2x128xf32>
    %61 = arith.mulf %60, %0 : vector<2x128xf32>
    %62 = vector.broadcast %56 : vector<1x128xf32> to vector<2x128xf32>
    %63 = arith.addf %61, %62 : vector<2x128xf32>
    %64 = math.sin %63 : vector<2x128xf32>
    %65 = vector.broadcast %59 : vector<1x128xf32> to vector<2x128xf32>
    %66 = arith.mulf %65, %64 : vector<2x128xf32>
    %67 = arith.addf %51, %66 : vector<2x128xf32>
    %c4_i32 = arith.constant 4 : i32
    %68 = arith.index_cast %c4_i32 : i32 to index
    %c0_20 = arith.constant 0 : index
    %69 = vector.load %arg3[%68, %c0_20] : memref<25x128xf32, #tpu.memory_space<vmem>>, vector<1x128xf32>
    %c8_i32_21 = arith.constant 8 : i32
    %70 = arith.addi %c8_i32_21, %c4_i32 : i32
    %71 = arith.index_cast %70 : i32 to index
    %c0_22 = arith.constant 0 : index
    %72 = vector.load %arg3[%71, %c0_22] : memref<25x128xf32, #tpu.memory_space<vmem>>, vector<1x128xf32>
    %c16_i32_23 = arith.constant 16 : i32
    %73 = arith.addi %c16_i32_23, %c4_i32 : i32
    %74 = arith.index_cast %73 : i32 to index
    %c0_24 = arith.constant 0 : index
    %75 = vector.load %arg3[%74, %c0_24] : memref<25x128xf32, #tpu.memory_space<vmem>>, vector<1x128xf32>
    %76 = vector.broadcast %69 : vector<1x128xf32> to vector<2x128xf32>
    %77 = arith.mulf %76, %0 : vector<2x128xf32>
    %78 = vector.broadcast %72 : vector<1x128xf32> to vector<2x128xf32>
    %79 = arith.addf %77, %78 : vector<2x128xf32>
    %80 = math.sin %79 : vector<2x128xf32>
    %81 = vector.broadcast %75 : vector<1x128xf32> to vector<2x128xf32>
    %82 = arith.mulf %81, %80 : vector<2x128xf32>
    %83 = arith.addf %67, %82 : vector<2x128xf32>
    %c5_i32 = arith.constant 5 : i32
    %84 = arith.index_cast %c5_i32 : i32 to index
    %c0_25 = arith.constant 0 : index
    %85 = vector.load %arg3[%84, %c0_25] : memref<25x128xf32, #tpu.memory_space<vmem>>, vector<1x128xf32>
    %c8_i32_26 = arith.constant 8 : i32
    %86 = arith.addi %c8_i32_26, %c5_i32 : i32
    %87 = arith.index_cast %86 : i32 to index
    %c0_27 = arith.constant 0 : index
    %88 = vector.load %arg3[%87, %c0_27] : memref<25x128xf32, #tpu.memory_space<vmem>>, vector<1x128xf32>
    %c16_i32_28 = arith.constant 16 : i32
    %89 = arith.addi %c16_i32_28, %c5_i32 : i32
    %90 = arith.index_cast %89 : i32 to index
    %c0_29 = arith.constant 0 : index
    %91 = vector.load %arg3[%90, %c0_29] : memref<25x128xf32, #tpu.memory_space<vmem>>, vector<1x128xf32>
    %92 = vector.broadcast %85 : vector<1x128xf32> to vector<2x128xf32>
    %93 = arith.mulf %92, %0 : vector<2x128xf32>
    %94 = vector.broadcast %88 : vector<1x128xf32> to vector<2x128xf32>
    %95 = arith.addf %93, %94 : vector<2x128xf32>
    %96 = math.sin %95 : vector<2x128xf32>
    %97 = vector.broadcast %91 : vector<1x128xf32> to vector<2x128xf32>
    %98 = arith.mulf %97, %96 : vector<2x128xf32>
    %99 = arith.addf %83, %98 : vector<2x128xf32>
    %c6_i32 = arith.constant 6 : i32
    %100 = arith.index_cast %c6_i32 : i32 to index
    %c0_30 = arith.constant 0 : index
    %101 = vector.load %arg3[%100, %c0_30] : memref<25x128xf32, #tpu.memory_space<vmem>>, vector<1x128xf32>
    %c8_i32_31 = arith.constant 8 : i32
    %102 = arith.addi %c8_i32_31, %c6_i32 : i32
    %103 = arith.index_cast %102 : i32 to index
    %c0_32 = arith.constant 0 : index
    %104 = vector.load %arg3[%103, %c0_32] : memref<25x128xf32, #tpu.memory_space<vmem>>, vector<1x128xf32>
    %c16_i32_33 = arith.constant 16 : i32
    %105 = arith.addi %c16_i32_33, %c6_i32 : i32
    %106 = arith.index_cast %105 : i32 to index
    %c0_34 = arith.constant 0 : index
    %107 = vector.load %arg3[%106, %c0_34] : memref<25x128xf32, #tpu.memory_space<vmem>>, vector<1x128xf32>
    %108 = vector.broadcast %101 : vector<1x128xf32> to vector<2x128xf32>
    %109 = arith.mulf %108, %0 : vector<2x128xf32>
    %110 = vector.broadcast %104 : vector<1x128xf32> to vector<2x128xf32>
    %111 = arith.addf %109, %110 : vector<2x128xf32>
    %112 = math.sin %111 : vector<2x128xf32>
    %113 = vector.broadcast %107 : vector<1x128xf32> to vector<2x128xf32>
    %114 = arith.mulf %113, %112 : vector<2x128xf32>
    %115 = arith.addf %99, %114 : vector<2x128xf32>
    %c7_i32 = arith.constant 7 : i32
    %116 = arith.index_cast %c7_i32 : i32 to index
    %c0_35 = arith.constant 0 : index
    %117 = vector.load %arg3[%116, %c0_35] : memref<25x128xf32, #tpu.memory_space<vmem>>, vector<1x128xf32>
    %c8_i32_36 = arith.constant 8 : i32
    %118 = arith.addi %c8_i32_36, %c7_i32 : i32
    %119 = arith.index_cast %118 : i32 to index
    %c0_37 = arith.constant 0 : index
    %120 = vector.load %arg3[%119, %c0_37] : memref<25x128xf32, #tpu.memory_space<vmem>>, vector<1x128xf32>
    %c16_i32_38 = arith.constant 16 : i32
    %121 = arith.addi %c16_i32_38, %c7_i32 : i32
    %122 = arith.index_cast %121 : i32 to index
    %c0_39 = arith.constant 0 : index
    %123 = vector.load %arg3[%122, %c0_39] : memref<25x128xf32, #tpu.memory_space<vmem>>, vector<1x128xf32>
    %124 = vector.broadcast %117 : vector<1x128xf32> to vector<2x128xf32>
    %125 = arith.mulf %124, %0 : vector<2x128xf32>
    %126 = vector.broadcast %120 : vector<1x128xf32> to vector<2x128xf32>
    %127 = arith.addf %125, %126 : vector<2x128xf32>
    %128 = math.sin %127 : vector<2x128xf32>
    %129 = vector.broadcast %123 : vector<1x128xf32> to vector<2x128xf32>
    %130 = arith.mulf %129, %128 : vector<2x128xf32>
    %131 = arith.addf %115, %130 : vector<2x128xf32>
    %c8_i32_40 = arith.constant 8 : i32
    %c0_41 = arith.constant 0 : index
    %c0_42 = arith.constant 0 : index
    %132 = vector.load %arg4[%c0_41, %c0_42] : memref<2x128xf32, #tpu.memory_space<vmem>>, vector<2x128xf32>
    tpu.vector_store %arg4[%c0_41, %c0_42], %131 {strides = array<i32>} : memref<2x128xf32, #tpu.memory_space<vmem>>, vector<2x128xf32>,
    return
  }
  func.func @transform_0(%arg0: i32, %arg1: i32) -> (i32, i32) {
    %c0_i32 = arith.constant 0 : i32
    return %arg0, %arg1 : i32, i32
  }
  func.func @transform_1(%arg0: i32, %arg1: i32) -> (i32, i32) {
    %c0_i32 = arith.constant 0 : i32
    %c0_i32_0 = arith.constant 0 : i32
    return %c0_i32, %arg1 : i32, i32
  }
  func.func @transform_2(%arg0: i32, %arg1: i32) -> (i32, i32) {
    %c0_i32 = arith.constant 0 : i32
    return %arg0, %arg1 : i32, i32
  }
}

</mosaic_0001>

<llo_original>
// kernel: tpu_custom_call.1
$region0: #{tpu_custom_call.1}
  #allocation0 [shape = 'u32[]', space=smem, size = 0x4, offset = 0x4, fixed_abs, tag = 'smem constant byte address 0x4 - core index']
  #allocation1 [shape = 'u32[144,128]{1,0:T(1,128)}', space=vmem, size = 0x12000, scoped, tag = 'internal scratch']
  %s0 = inlined_call_operand.hbm [shape: f32[2,128], index: 0, kind: input, shape index: {}]
  %s1 = inlined_call_operand.hbm [shape: f32[25,128], index: 1, kind: input, shape index: {}]
  %s2 = inlined_call_operand.hbm [shape: f32[2,128], index: 2, kind: output, shape index: {}]
  %s3 = sld [smem:[#allocation0]]
  $region26: #{tpu_custom_call.1} parent=0
    _
  %s5 = ssub.s32 1, %s3
  %s6 = scalar_select 0, %s5, %s3
  $region1: #{tpu_custom_call.1} parent=0
    #allocation2 [shape = 'u8[1024]{0}', space=vmem, size = 0x400, scoped, tag = 'input window, operand 0, single buffered']
    #allocation3 [shape = 's32[1]{0}', space=sflag, size = 0x4, scoped, tag = 'scoped memory for tpu_custom_call.1']
    #allocation4 [shape = 's32[1]{0}', space=sflag, size = 0x4, scoped, tag = 'scoped memory for tpu_custom_call.1']
    #allocation5 [shape = 'u8[16384]{0}', space=vmem, size = 0x4000, scoped, tag = 'input window, operand 1, single buffered']
    #allocation6 [shape = 's32[1]{0}', space=sflag, size = 0x4, scoped, tag = 'scoped memory for tpu_custom_call.1']
    #allocation7 [shape = 'u8[1024]{0}', space=vmem, size = 0x400, scoped, tag = 'output window, operand 0, single buffered']
    %7 = vsyncpa [#allocation3], 0
    %8 = vsyncpa [#allocation6], 0
    %9 = vsyncpa [#allocation4], 0
    // Predicated region
    $region2: #{tpu_custom_call.1} parent=1 // pred_check
      _
    $region3: #{tpu_custom_call.1} parent=1 // pred_check_branch
      %11 = sbr.rel (0) target = $region5
    $region4: #{tpu_custom_call.1} parent=1 // pred_region
      %s13 = ssub.s32 32, 32
      %14 = vsyncadd [#allocation3], %s13
      %s16 = sshll.u32 [#allocation2], 4
      %s17 = int_to_ptr.vmem [resolvable:$true] %s16
      %19 = dma.hbm_to_vmem [thread:$0]  %s0, 32, %s17, [#allocation3]
    $region5: #{tpu_custom_call.1} parent=1 // pred_fallthru
      _
    // Predicated region
    $region6: #{tpu_custom_call.1} parent=1 // pred_check
      _
    $region7: #{tpu_custom_call.1} parent=1 // pred_check_branch
      %21 = sbr.rel (0) target = $region9
    $region8: #{tpu_custom_call.1} parent=1 // pred_region
      %s23 = ssub.s32 512, 512
      %24 = vsyncadd [#allocation6], %s23
      %s25 = sshll.u32 [#allocation5], 4
      %s26 = int_to_ptr.vmem [resolvable:$true] %s25
      %31 = dma.hbm_to_vmem [thread:$0]  %s1, 512, %s26, [#allocation6], 128, 128, 8
    $region9: #{tpu_custom_call.1} parent=1 // pred_fallthru
      _
    // Predicated region
    $region10: #{tpu_custom_call.1} parent=1 // pred_check
      _
    $region11: #{tpu_custom_call.1} parent=1 // pred_check_branch
      %33 = sbr.rel (0) target = $region13
    $region12: #{tpu_custom_call.1} parent=1 // pred_region
      %34 = dma.done [#allocation3], 32
    $region13: #{tpu_custom_call.1} parent=1 // pred_fallthru
      _
    // Predicated region
    $region14: #{tpu_custom_call.1} parent=1 // pred_check
      _
    $region15: #{tpu_custom_call.1} parent=1 // pred_check_branch
      %36 = sbr.rel (0) target = $region17
    $region16: #{tpu_custom_call.1} parent=1 // pred_region
      %37 = dma.done [#allocation6], 512
    $region17: #{tpu_custom_call.1} parent=1 // pred_fallthru
      _
    %v38 = vld [vmem:[#allocation2] sm:$0x3]
    %v39 = vld [vmem:[#allocation5 + $0x18] sm:$0x1]
    %v40 = vlaneseq
    %v41 = vshrl.u32 %v40, 7
    %v42 = vsub.s32 0, %v41
    %v43 = vrot.slane %v39, %v42
    %v44 = vld [vmem:[#allocation5] sm:$0x1]
    %v45 = vld [vmem:[#allocation5 + $0x8] sm:$0x1]
    %v46 = vld [vmem:[#allocation5 + $0x10] sm:$0x1]
    %v47 = vlaneseq
    %v48 = vshrl.u32 %v47, 7
    %v49 = vsub.s32 0, %v48
    %v50 = vrot.slane %v44, %v49
    %v51 = vmul.f32 %v50, %v38
    %v52 = vlaneseq
    %v53 = vshrl.u32 %v52, 7
    %v54 = vsub.s32 0, %v53
    %v55 = vrot.slane %v45, %v54
    %v56 = vadd.f32 %v51, %v55
    %v57 = vand.u32 2147483647, %v56
    %vm58 = vcmp.le.f32.partialorder %v57, 0.7853982
    %vm59 = vcmp.lt.s32.totalorder %v56, 0
    %v60 = vand.u32 %v56, 2139095040
    %v61 = vshrl.u32 %v60, 23
    %v62 = vsub.s32 %v61, 127
    %v63 = vand.u32 2147483647, %v56
    %v64 = vand.u32 %v63, 8388607
    %v65 = vor.u32 %v64, 8388608
    %v66 = vsub.s32 0, %v65
    %v67 = vadd.s32 %v62, 1
    %vm68 = vcmp.gt.s32.totalorder %v67, 0
    %v69 = vsel %vm68, %v67, 0
    %v70 = vshrl.u32 %v69, 5
    %v71 = vand.u32 %v69, 31
    %v72 = vsub.s32 32, %v71
    %v73 = vshrl.u32 683565275, %v72
    %v74 = vshll.u32 683565275, %v71
    %v75 = vshrl.u32 2475754826, %v72
    %v76 = vor.u32 %v74, %v75
    %v77 = vshll.u32 2475754826, %v71
    %v78 = vshrl.u32 2131351028, %v72
    %v79 = vor.u32 %v77, %v78
    %v80 = vshll.u32 2131351028, %v71
    %v81 = vshrl.u32 2102212464, %v72
    %v82 = vor.u32 %v80, %v81
    %v83 = vshll.u32 2102212464, %v71
    %v84 = vshrl.u32 920167782, %v72
    %v85 = vor.u32 %v83, %v84
    %v86 = vshll.u32 920167782, %v71
    %v87 = vshrl.u32 1326507024, %v72
    %v88 = vor.u32 %v86, %v87
    %vm89 = vcmp.lt.s32.totalorder %v70, 1
    %vm90 = vcmp.lt.s32.totalorder %v70, 2
    %vm91 = vcmp.lt.s32.totalorder %v70, 3
    %vm92 = vcmp.lt.s32.totalorder %v70, 4
    %v93 = vsel %vm89, %v73, %v76
    %v94 = vsel %vm92, %v82, 2102212464
    %v95 = vsel %vm91, %v79, %v94
    %v96 = vsel %vm90, %v93, %v95
    %v97 = vsel %vm89, %v76, %v79
    %v98 = vsel %vm92, %v85, 920167782
    %v99 = vsel %vm91, %v82, %v98
    %v100 = vsel %vm90, %v97, %v99
    %v101 = vsel %vm89, %v79, %v82
    %v102 = vsel %vm92, %v88, 1326507024
    %v103 = vsel %vm91, %v85, %v102
    %v104 = vsel %vm90, %v101, %v103
    %v105 = vshll.u32 %v65, 8
    %v106 = vmul.u32.u64.compose %v105, %v104
    %v107 = vextract.low.u32 %v106
    %v108 = vextract.high.u32 %v106
    %v109 = vmul.u32.u64.compose %v105, %v100
    %v110 = vextract.low.u32 %v109
    %v111 = vextract.high.u32 %v109
    %v112 = vmul.u32 %v105, %v96
    %v113 = vadd.s32 %v108, %v110
    %vm114 = vc.u32 %v108, %v110
    %v115 = vadd.s32 %v111, 1
    %v116 = vsel %vm114, %v115, %v111
    %v117 = vadd.s32 %v112, %v116
    %v118 = vadd.s32 %v117, 536870912
    %v119 = vshrl.u32 %v118, 30
    %v120 = vshll.u32 %v119, 30
    %v121 = vsub.s32 %v117, %v120
    %vm122 = vcmp.lt.s32.totalorder %v121, 0
    %v123 = vsub.s32 0, %v121
    %v124 = vsel %vm122, %v123, %v121
    %v125 = vclz %v124
    %v126 = vsub.s32 %v125, 2
    %vm127 = vcmp.gt.s32.totalorder 0, %v126
    %v128 = vsel %vm127, 0, %v126
    %v129 = vsub.s32 32, %v128
    %v130 = vshll.u32 %v121, %v128
    %v131 = vshrl.u32 %v113, %v129
    %v132 = vor.u32 %v130, %v131
    %v133 = vsub.s32 4294967266, %v128
    %v134 = vadd.s32 %v133, 127
    %v135 = vshll.u32 %v134, 23
    %v136 = vor.u32 4788187, %v135
    %v137 = vand.u32 2147483647, %v136
    %v139 = vcvt.s32.f32 %v132
    %v140 = vmul.f32 %v139, %v137
    %v141 = vxor.u32 %v140, 2147483648
    %v142 = vsel %vm59, %v141, %v140
    %v143 = vsub.s32 4, %v119
    %v144 = vsel %vm59, %v143, %v119
    %v145 = vsel %vm58, %v56, %v142
    %v146 = vsel %vm58, 0, %v144
    %v147 = vcosq.f32.pop %v145
    %v148 = vsinq.f32.pop %v145
    %vm149 = vweird.f32 %v56
    %v150 = vadd.s32 %v146, 3
    %v151 = vand.u32 %v150, 3
    %vm152 = vcmp.lt.s32.totalorder %v151, 2
    %vm153 = vcmp.eq.s32.totalorder %v151, 0
    %v154 = vxor.u32 %v148, 2147483648
    %v155 = vsel %vm153, %v147, %v154
    %vm156 = vcmp.eq.s32.totalorder %v151, 2
    %v157 = vxor.u32 %v147, 2147483648
    %v158 = vsel %vm156, %v157, %v148
    %v159 = vsel %vm152, %v155, %v158
    %v160 = vsel %vm149, nan, %v159
    %v161 = vlaneseq
    %v162 = vshrl.u32 %v161, 7
    %v163 = vsub.s32 0, %v162
    %v164 = vrot.slane %v46, %v163
    %v165 = vmul.f32 %v164, %v160
    %v166 = vadd.f32 %v43, %v165
    %v167 = vld [vmem:[#allocation5 + $0x1] sm:$0x1]
    %v168 = vld [vmem:[#allocation5 + $0x9] sm:$0x1]
    %v169 = vld [vmem:[#allocation5 + $0x11] sm:$0x1]
    %v170 = vlaneseq
    %v171 = vshrl.u32 %v170, 7
    %v172 = vsub.s32 0, %v171
    %v173 = vrot.slane %v167, %v172
    %v174 = vmul.f32 %v173, %v38
    %v175 = vlaneseq
    %v176 = vshrl.u32 %v175, 7
    %v177 = vsub.s32 0, %v176
    %v178 = vrot.slane %v168, %v177
    %v179 = vadd.f32 %v174, %v178
    %v180 = vand.u32 2147483647, %v179
    %vm181 = vcmp.le.f32.partialorder %v180, 0.7853982
    %vm182 = vcmp.lt.s32.totalorder %v179, 0
    %v183 = vand.u32 %v179, 2139095040
    %v184 = vshrl.u32 %v183, 23
    %v185 = vsub.s32 %v184, 127
    %v186 = vand.u32 2147483647, %v179
    %v187 = vand.u32 %v186, 8388607
    %v188 = vor.u32 %v187, 8388608
    %v189 = vsub.s32 0, %v188
    %v190 = vadd.s32 %v185, 1
    %vm191 = vcmp.gt.s32.totalorder %v190, 0
    %v192 = vsel %vm191, %v190, 0
    %v193 = vshrl.u32 %v192, 5
    %v194 = vand.u32 %v192, 31
    %v195 = vsub.s32 32, %v194
    %v196 = vshrl.u32 683565275, %v195
    %v197 = vshll.u32 683565275, %v194
    %v198 = vshrl.u32 2475754826, %v195
    %v199 = vor.u32 %v197, %v198
    %v200 = vshll.u32 2475754826, %v194
    %v201 = vshrl.u32 2131351028, %v195
    %v202 = vor.u32 %v200, %v201
    %v203 = vshll.u32 2131351028, %v194
    %v204 = vshrl.u32 2102212464, %v195
    %v205 = vor.u32 %v203, %v204
    %v206 = vshll.u32 2102212464, %v194
    %v207 = vshrl.u32 920167782, %v195
    %v208 = vor.u32 %v206, %v207
    %v209 = vshll.u32 920167782, %v194
    %v210 = vshrl.u32 1326507024, %v195
    %v211 = vor.u32 %v209, %v210
    %vm212 = vcmp.lt.s32.totalorder %v193, 1
    %vm213 = vcmp.lt.s32.totalorder %v193, 2
    %vm214 = vcmp.lt.s32.totalorder %v193, 3
    %vm215 = vcmp.lt.s32.totalorder %v193, 4
    %v216 = vsel %vm212, %v196, %v199
    %v217 = vsel %vm215, %v205, 2102212464
    %v218 = vsel %vm214, %v202, %v217
    %v219 = vsel %vm213, %v216, %v218
    %v220 = vsel %vm212, %v199, %v202
    %v221 = vsel %vm215, %v208, 920167782
    %v222 = vsel %vm214, %v205, %v221
    %v223 = vsel %vm213, %v220, %v222
    %v224 = vsel %vm212, %v202, %v205
    %v225 = vsel %vm215, %v211, 1326507024
    %v226 = vsel %vm214, %v208, %v225
    %v227 = vsel %vm213, %v224, %v226
    %v228 = vshll.u32 %v188, 8
    %v229 = vmul.u32.u64.compose %v228, %v227
    %v230 = vextract.low.u32 %v229
    %v231 = vextract.high.u32 %v229
    %v232 = vmul.u32.u64.compose %v228, %v223
    %v233 = vextract.low.u32 %v232
    %v234 = vextract.high.u32 %v232
    %v235 = vmul.u32 %v228, %v219
    %v236 = vadd.s32 %v231, %v233
    %vm237 = vc.u32 %v231, %v233
    %v238 = vadd.s32 %v234, 1
    %v239 = vsel %vm237, %v238, %v234
    %v240 = vadd.s32 %v235, %v239
    %v241 = vadd.s32 %v240, 536870912
    %v242 = vshrl.u32 %v241, 30
    %v243 = vshll.u32 %v242, 30
    %v244 = vsub.s32 %v240, %v243
    %vm245 = vcmp.lt.s32.totalorder %v244, 0
    %v246 = vsub.s32 0, %v244
    %v247 = vsel %vm245, %v246, %v244
    %v248 = vclz %v247
    %v249 = vsub.s32 %v248, 2
    %vm250 = vcmp.gt.s32.totalorder 0, %v249
    %v251 = vsel %vm250, 0, %v249
    %v252 = vsub.s32 32, %v251
    %v253 = vshll.u32 %v244, %v251
    %v254 = vshrl.u32 %v236, %v252
    %v255 = vor.u32 %v253, %v254
    %v256 = vsub.s32 4294967266, %v251
    %v257 = vadd.s32 %v256, 127
    %v258 = vshll.u32 %v257, 23
    %v259 = vor.u32 4788187, %v258
    %v260 = vand.u32 2147483647, %v259
    %v262 = vcvt.s32.f32 %v255
    %v263 = vmul.f32 %v262, %v260
    %v264 = vxor.u32 %v263, 2147483648
    %v265 = vsel %vm182, %v264, %v263
    %v266 = vsub.s32 4, %v242
    %v267 = vsel %vm182, %v266, %v242
    %v268 = vsel %vm181, %v179, %v265
    %v269 = vsel %vm181, 0, %v267
    %v270 = vcosq.f32.pop %v268
    %v271 = vsinq.f32.pop %v268
    %vm272 = vweird.f32 %v179
    %v273 = vadd.s32 %v269, 3
    %v274 = vand.u32 %v273, 3
    %vm275 = vcmp.lt.s32.totalorder %v274, 2
    %vm276 = vcmp.eq.s32.totalorder %v274, 0
    %v277 = vxor.u32 %v271, 2147483648
    %v278 = vsel %vm276, %v270, %v277
    %vm279 = vcmp.eq.s32.totalorder %v274, 2
    %v280 = vxor.u32 %v270, 2147483648
    %v281 = vsel %vm279, %v280, %v271
    %v282 = vsel %vm275, %v278, %v281
    %v283 = vsel %vm272, nan, %v282
    %v284 = vlaneseq
    %v285 = vshrl.u32 %v284, 7
    %v286 = vsub.s32 0, %v285
    %v287 = vrot.slane %v169, %v286
    %v288 = vmul.f32 %v287, %v283
    %v289 = vadd.f32 %v166, %v288
    %v290 = vld [vmem:[#allocation5 + $0x2] sm:$0x1]
    %v291 = vld [vmem:[#allocation5 + $0xa] sm:$0x1]
    %v292 = vld [vmem:[#allocation5 + $0x12] sm:$0x1]
    %v293 = vlaneseq
    %v294 = vshrl.u32 %v293, 7
    %v295 = vsub.s32 0, %v294
    %v296 = vrot.slane %v290, %v295
    %v297 = vmul.f32 %v296, %v38
    %v298 = vlaneseq
    %v299 = vshrl.u32 %v298, 7
    %v300 = vsub.s32 0, %v299
    %v301 = vrot.slane %v291, %v300
    %v302 = vadd.f32 %v297, %v301
    %v303 = vand.u32 2147483647, %v302
    %vm304 = vcmp.le.f32.partialorder %v303, 0.7853982
    %vm305 = vcmp.lt.s32.totalorder %v302, 0
    %v306 = vand.u32 %v302, 2139095040
    %v307 = vshrl.u32 %v306, 23
    %v308 = vsub.s32 %v307, 127
    %v309 = vand.u32 2147483647, %v302
    %v310 = vand.u32 %v309, 8388607
    %v311 = vor.u32 %v310, 8388608
    %v312 = vsub.s32 0, %v311
    %v313 = vadd.s32 %v308, 1
    %vm314 = vcmp.gt.s32.totalorder %v313, 0
    %v315 = vsel %vm314, %v313, 0
    %v316 = vshrl.u32 %v315, 5
    %v317 = vand.u32 %v315, 31
    %v318 = vsub.s32 32, %v317
    %v319 = vshrl.u32 683565275, %v318
    %v320 = vshll.u32 683565275, %v317
    %v321 = vshrl.u32 2475754826, %v318
    %v322 = vor.u32 %v320, %v321
    %v323 = vshll.u32 2475754826, %v317
    %v324 = vshrl.u32 2131351028, %v318
    %v325 = vor.u32 %v323, %v324
    %v326 = vshll.u32 2131351028, %v317
    %v327 = vshrl.u32 2102212464, %v318
    %v328 = vor.u32 %v326, %v327
    %v329 = vshll.u32 2102212464, %v317
    %v330 = vshrl.u32 920167782, %v318
    %v331 = vor.u32 %v329, %v330
    %v332 = vshll.u32 920167782, %v317
    %v333 = vshrl.u32 1326507024, %v318
    %v334 = vor.u32 %v332, %v333
    %vm335 = vcmp.lt.s32.totalorder %v316, 1
    %vm336 = vcmp.lt.s32.totalorder %v316, 2
    %vm337 = vcmp.lt.s32.totalorder %v316, 3
    %vm338 = vcmp.lt.s32.totalorder %v316, 4
    %v339 = vsel %vm335, %v319, %v322
    %v340 = vsel %vm338, %v328, 2102212464
    %v341 = vsel %vm337, %v325, %v340
    %v342 = vsel %vm336, %v339, %v341
    %v343 = vsel %vm335, %v322, %v325
    %v344 = vsel %vm338, %v331, 920167782
    %v345 = vsel %vm337, %v328, %v344
    %v346 = vsel %vm336, %v343, %v345
    %v347 = vsel %vm335, %v325, %v328
    %v348 = vsel %vm338, %v334, 1326507024
    %v349 = vsel %vm337, %v331, %v348
    %v350 = vsel %vm336, %v347, %v349
    %v351 = vshll.u32 %v311, 8
    %v352 = vmul.u32.u64.compose %v351, %v350
    %v353 = vextract.low.u32 %v352
    %v354 = vextract.high.u32 %v352
    %v355 = vmul.u32.u64.compose %v351, %v346
    %v356 = vextract.low.u32 %v355
    %v357 = vextract.high.u32 %v355
    %v358 = vmul.u32 %v351, %v342
    %v359 = vadd.s32 %v354, %v356
    %vm360 = vc.u32 %v354, %v356
    %v361 = vadd.s32 %v357, 1
    %v362 = vsel %vm360, %v361, %v357
    %v363 = vadd.s32 %v358, %v362
    %v364 = vadd.s32 %v363, 536870912
    %v365 = vshrl.u32 %v364, 30
    %v366 = vshll.u32 %v365, 30
    %v367 = vsub.s32 %v363, %v366
    %vm368 = vcmp.lt.s32.totalorder %v367, 0
    %v369 = vsub.s32 0, %v367
    %v370 = vsel %vm368, %v369, %v367
    %v371 = vclz %v370
    %v372 = vsub.s32 %v371, 2
    %vm373 = vcmp.gt.s32.totalorder 0, %v372
    %v374 = vsel %vm373, 0, %v372
    %v375 = vsub.s32 32, %v374
    %v376 = vshll.u32 %v367, %v374
    %v377 = vshrl.u32 %v359, %v375
    %v378 = vor.u32 %v376, %v377
    %v379 = vsub.s32 4294967266, %v374
    %v380 = vadd.s32 %v379, 127
    %v381 = vshll.u32 %v380, 23
    %v382 = vor.u32 4788187, %v381
    %v383 = vand.u32 2147483647, %v382
    %v385 = vcvt.s32.f32 %v378
    %v386 = vmul.f32 %v385, %v383
    %v387 = vxor.u32 %v386, 2147483648
    %v388 = vsel %vm305, %v387, %v386
    %v389 = vsub.s32 4, %v365
    %v390 = vsel %vm305, %v389, %v365
    %v391 = vsel %vm304, %v302, %v388
    %v392 = vsel %vm304, 0, %v390
    %v393 = vcosq.f32.pop %v391
    %v394 = vsinq.f32.pop %v391
    %vm395 = vweird.f32 %v302
    %v396 = vadd.s32 %v392, 3
    %v397 = vand.u32 %v396, 3
    %vm398 = vcmp.lt.s32.totalorder %v397, 2
    %vm399 = vcmp.eq.s32.totalorder %v397, 0
    %v400 = vxor.u32 %v394, 2147483648
    %v401 = vsel %vm399, %v393, %v400
    %vm402 = vcmp.eq.s32.totalorder %v397, 2
    %v403 = vxor.u32 %v393, 2147483648
    %v404 = vsel %vm402, %v403, %v394
    %v405 = vsel %vm398, %v401, %v404
    %v406 = vsel %vm395, nan, %v405
    %v407 = vlaneseq
    %v408 = vshrl.u32 %v407, 7
    %v409 = vsub.s32 0, %v408
    %v410 = vrot.slane %v292, %v409
    %v411 = vmul.f32 %v410, %v406
    %v412 = vadd.f32 %v289, %v411
    %v413 = vld [vmem:[#allocation5 + $0x3] sm:$0x1]
    %v414 = vld [vmem:[#allocation5 + $0xb] sm:$0x1]
    %v415 = vld [vmem:[#allocation5 + $0x13] sm:$0x1]
    %v416 = vlaneseq
    %v417 = vshrl.u32 %v416, 7
    %v418 = vsub.s32 0, %v417
    %v419 = vrot.slane %v413, %v418
    %v420 = vmul.f32 %v419, %v38
    %v421 = vlaneseq
    %v422 = vshrl.u32 %v421, 7
    %v423 = vsub.s32 0, %v422
    %v424 = vrot.slane %v414, %v423
    %v425 = vadd.f32 %v420, %v424
    %v426 = vand.u32 2147483647, %v425
    %vm427 = vcmp.le.f32.partialorder %v426, 0.7853982
    %vm428 = vcmp.lt.s32.totalorder %v425, 0
    %v429 = vand.u32 %v425, 2139095040
    %v430 = vshrl.u32 %v429, 23
    %v431 = vsub.s32 %v430, 127
    %v432 = vand.u32 2147483647, %v425
    %v433 = vand.u32 %v432, 8388607
    %v434 = vor.u32 %v433, 8388608
    %v435 = vsub.s32 0, %v434
    %v436 = vadd.s32 %v431, 1
    %vm437 = vcmp.gt.s32.totalorder %v436, 0
    %v438 = vsel %vm437, %v436, 0
    %v439 = vshrl.u32 %v438, 5
    %v440 = vand.u32 %v438, 31
    %v441 = vsub.s32 32, %v440
    %v442 = vshrl.u32 683565275, %v441
    %v443 = vshll.u32 683565275, %v440
    %v444 = vshrl.u32 2475754826, %v441
    %v445 = vor.u32 %v443, %v444
    %v446 = vshll.u32 2475754826, %v440
    %v447 = vshrl.u32 2131351028, %v441
    %v448 = vor.u32 %v446, %v447
    %v449 = vshll.u32 2131351028, %v440
    %v450 = vshrl.u32 2102212464, %v441
    %v451 = vor.u32 %v449, %v450
    %v452 = vshll.u32 2102212464, %v440
    %v453 = vshrl.u32 920167782, %v441
    %v454 = vor.u32 %v452, %v453
    %v455 = vshll.u32 920167782, %v440
    %v456 = vshrl.u32 1326507024, %v441
    %v457 = vor.u32 %v455, %v456
    %vm458 = vcmp.lt.s32.totalorder %v439, 1
    %vm459 = vcmp.lt.s32.totalorder %v439, 2
    %vm460 = vcmp.lt.s32.totalorder %v439, 3
    %vm461 = vcmp.lt.s32.totalorder %v439, 4
    %v462 = vsel %vm458, %v442, %v445
    %v463 = vsel %vm461, %v451, 2102212464
    %v464 = vsel %vm460, %v448, %v463
    %v465 = vsel %vm459, %v462, %v464
    %v466 = vsel %vm458, %v445, %v448
    %v467 = vsel %vm461, %v454, 920167782
    %v468 = vsel %vm460, %v451, %v467
    %v469 = vsel %vm459, %v466, %v468
    %v470 = vsel %vm458, %v448, %v451
    %v471 = vsel %vm461, %v457, 1326507024
    %v472 = vsel %vm460, %v454, %v471
    %v473 = vsel %vm459, %v470, %v472
    %v474 = vshll.u32 %v434, 8
    %v475 = vmul.u32.u64.compose %v474, %v473
    %v476 = vextract.low.u32 %v475
    %v477 = vextract.high.u32 %v475
    %v478 = vmul.u32.u64.compose %v474, %v469
    %v479 = vextract.low.u32 %v478
    %v480 = vextract.high.u32 %v478
    %v481 = vmul.u32 %v474, %v465
    %v482 = vadd.s32 %v477, %v479
    %vm483 = vc.u32 %v477, %v479
    %v484 = vadd.s32 %v480, 1
    %v485 = vsel %vm483, %v484, %v480
    %v486 = vadd.s32 %v481, %v485
    %v487 = vadd.s32 %v486, 536870912
    %v488 = vshrl.u32 %v487, 30
    %v489 = vshll.u32 %v488, 30
    %v490 = vsub.s32 %v486, %v489
    %vm491 = vcmp.lt.s32.totalorder %v490, 0
    %v492 = vsub.s32 0, %v490
    %v493 = vsel %vm491, %v492, %v490
    %v494 = vclz %v493
    %v495 = vsub.s32 %v494, 2
    %vm496 = vcmp.gt.s32.totalorder 0, %v495
    %v497 = vsel %vm496, 0, %v495
    %v498 = vsub.s32 32, %v497
    %v499 = vshll.u32 %v490, %v497
    %v500 = vshrl.u32 %v482, %v498
    %v501 = vor.u32 %v499, %v500
    %v502 = vsub.s32 4294967266, %v497
    %v503 = vadd.s32 %v502, 127
    %v504 = vshll.u32 %v503, 23
    %v505 = vor.u32 4788187, %v504
    %v506 = vand.u32 2147483647, %v505
    %v508 = vcvt.s32.f32 %v501
    %v509 = vmul.f32 %v508, %v506
    %v510 = vxor.u32 %v509, 2147483648
    %v511 = vsel %vm428, %v510, %v509
    %v512 = vsub.s32 4, %v488
    %v513 = vsel %vm428, %v512, %v488
    %v514 = vsel %vm427, %v425, %v511
    %v515 = vsel %vm427, 0, %v513
    %v516 = vcosq.f32.pop %v514
    %v517 = vsinq.f32.pop %v514
    %vm518 = vweird.f32 %v425
    %v519 = vadd.s32 %v515, 3
    %v520 = vand.u32 %v519, 3
    %vm521 = vcmp.lt.s32.totalorder %v520, 2
    %vm522 = vcmp.eq.s32.totalorder %v520, 0
    %v523 = vxor.u32 %v517, 2147483648
    %v524 = vsel %vm522, %v516, %v523
    %vm525 = vcmp.eq.s32.totalorder %v520, 2
    %v526 = vxor.u32 %v516, 2147483648
    %v527 = vsel %vm525, %v526, %v517
    %v528 = vsel %vm521, %v524, %v527
    %v529 = vsel %vm518, nan, %v528
    %v530 = vlaneseq
    %v531 = vshrl.u32 %v530, 7
    %v532 = vsub.s32 0, %v531
    %v533 = vrot.slane %v415, %v532
    %v534 = vmul.f32 %v533, %v529
    %v535 = vadd.f32 %v412, %v534
    %v536 = vld [vmem:[#allocation5 + $0x4] sm:$0x1]
    %v537 = vld [vmem:[#allocation5 + $0xc] sm:$0x1]
    %v538 = vld [vmem:[#allocation5 + $0x14] sm:$0x1]
    %v539 = vlaneseq
    %v540 = vshrl.u32 %v539, 7
    %v541 = vsub.s32 0, %v540
    %v542 = vrot.slane %v536, %v541
    %v543 = vmul.f32 %v542, %v38
    %v544 = vlaneseq
    %v545 = vshrl.u32 %v544, 7
    %v546 = vsub.s32 0, %v545
    %v547 = vrot.slane %v537, %v546
    %v548 = vadd.f32 %v543, %v547
    %v549 = vand.u32 2147483647, %v548
    %vm550 = vcmp.le.f32.partialorder %v549, 0.7853982
    %vm551 = vcmp.lt.s32.totalorder %v548, 0
    %v552 = vand.u32 %v548, 2139095040
    %v553 = vshrl.u32 %v552, 23
    %v554 = vsub.s32 %v553, 127
    %v555 = vand.u32 2147483647, %v548
    %v556 = vand.u32 %v555, 8388607
    %v557 = vor.u32 %v556, 8388608
    %v558 = vsub.s32 0, %v557
    %v559 = vadd.s32 %v554, 1
    %vm560 = vcmp.gt.s32.totalorder %v559, 0
    %v561 = vsel %vm560, %v559, 0
    %v562 = vshrl.u32 %v561, 5
    %v563 = vand.u32 %v561, 31
    %v564 = vsub.s32 32, %v563
    %v565 = vshrl.u32 683565275, %v564
    %v566 = vshll.u32 683565275, %v563
    %v567 = vshrl.u32 2475754826, %v564
    %v568 = vor.u32 %v566, %v567
    %v569 = vshll.u32 2475754826, %v563
    %v570 = vshrl.u32 2131351028, %v564
    %v571 = vor.u32 %v569, %v570
    %v572 = vshll.u32 2131351028, %v563
    %v573 = vshrl.u32 2102212464, %v564
    %v574 = vor.u32 %v572, %v573
    %v575 = vshll.u32 2102212464, %v563
    %v576 = vshrl.u32 920167782, %v564
    %v577 = vor.u32 %v575, %v576
    %v578 = vshll.u32 920167782, %v563
    %v579 = vshrl.u32 1326507024, %v564
    %v580 = vor.u32 %v578, %v579
    %vm581 = vcmp.lt.s32.totalorder %v562, 1
    %vm582 = vcmp.lt.s32.totalorder %v562, 2
    %vm583 = vcmp.lt.s32.totalorder %v562, 3
    %vm584 = vcmp.lt.s32.totalorder %v562, 4
    %v585 = vsel %vm581, %v565, %v568
    %v586 = vsel %vm584, %v574, 2102212464
    %v587 = vsel %vm583, %v571, %v586
    %v588 = vsel %vm582, %v585, %v587
    %v589 = vsel %vm581, %v568, %v571
    %v590 = vsel %vm584, %v577, 920167782
    %v591 = vsel %vm583, %v574, %v590
    %v592 = vsel %vm582, %v589, %v591
    %v593 = vsel %vm581, %v571, %v574
    %v594 = vsel %vm584, %v580, 1326507024
    %v595 = vsel %vm583, %v577, %v594
    %v596 = vsel %vm582, %v593, %v595
    %v597 = vshll.u32 %v557, 8
    %v598 = vmul.u32.u64.compose %v597, %v596
    %v599 = vextract.low.u32 %v598
    %v600 = vextract.high.u32 %v598
    %v601 = vmul.u32.u64.compose %v597, %v592
    %v602 = vextract.low.u32 %v601
    %v603 = vextract.high.u32 %v601
    %v604 = vmul.u32 %v597, %v588
    %v605 = vadd.s32 %v600, %v602
    %vm606 = vc.u32 %v600, %v602
    %v607 = vadd.s32 %v603, 1
    %v608 = vsel %vm606, %v607, %v603
    %v609 = vadd.s32 %v604, %v608
    %v610 = vadd.s32 %v609, 536870912
    %v611 = vshrl.u32 %v610, 30
    %v612 = vshll.u32 %v611, 30
    %v613 = vsub.s32 %v609, %v612
    %vm614 = vcmp.lt.s32.totalorder %v613, 0
    %v615 = vsub.s32 0, %v613
    %v616 = vsel %vm614, %v615, %v613
    %v617 = vclz %v616
    %v618 = vsub.s32 %v617, 2
    %vm619 = vcmp.gt.s32.totalorder 0, %v618
    %v620 = vsel %vm619, 0, %v618
    %v621 = vsub.s32 32, %v620
    %v622 = vshll.u32 %v613, %v620
    %v623 = vshrl.u32 %v605, %v621
    %v624 = vor.u32 %v622, %v623
    %v625 = vsub.s32 4294967266, %v620
    %v626 = vadd.s32 %v625, 127
    %v627 = vshll.u32 %v626, 23
    %v628 = vor.u32 4788187, %v627
    %v629 = vand.u32 2147483647, %v628
    %v631 = vcvt.s32.f32 %v624
    %v632 = vmul.f32 %v631, %v629
    %v633 = vxor.u32 %v632, 2147483648
    %v634 = vsel %vm551, %v633, %v632
    %v635 = vsub.s32 4, %v611
    %v636 = vsel %vm551, %v635, %v611
    %v637 = vsel %vm550, %v548, %v634
    %v638 = vsel %vm550, 0, %v636
    %v639 = vcosq.f32.pop %v637
    %v640 = vsinq.f32.pop %v637
    %vm641 = vweird.f32 %v548
    %v642 = vadd.s32 %v638, 3
    %v643 = vand.u32 %v642, 3
    %vm644 = vcmp.lt.s32.totalorder %v643, 2
    %vm645 = vcmp.eq.s32.totalorder %v643, 0
    %v646 = vxor.u32 %v640, 2147483648
    %v647 = vsel %vm645, %v639, %v646
    %vm648 = vcmp.eq.s32.totalorder %v643, 2
    %v649 = vxor.u32 %v639, 2147483648
    %v650 = vsel %vm648, %v649, %v640
    %v651 = vsel %vm644, %v647, %v650
    %v652 = vsel %vm641, nan, %v651
    %v653 = vlaneseq
    %v654 = vshrl.u32 %v653, 7
    %v655 = vsub.s32 0, %v654
    %v656 = vrot.slane %v538, %v655
    %v657 = vmul.f32 %v656, %v652
    %v658 = vadd.f32 %v535, %v657
    %v659 = vld [vmem:[#allocation5 + $0x5] sm:$0x1]
    %v660 = vld [vmem:[#allocation5 + $0xd] sm:$0x1]
    %v661 = vld [vmem:[#allocation5 + $0x15] sm:$0x1]
    %v662 = vlaneseq
    %v663 = vshrl.u32 %v662, 7
    %v664 = vsub.s32 0, %v663
    %v665 = vrot.slane %v659, %v664
    %v666 = vmul.f32 %v665, %v38
    %v667 = vlaneseq
    %v668 = vshrl.u32 %v667, 7
    %v669 = vsub.s32 0, %v668
    %v670 = vrot.slane %v660, %v669
    %v671 = vadd.f32 %v666, %v670
    %v672 = vand.u32 2147483647, %v671
    %vm673 = vcmp.le.f32.partialorder %v672, 0.7853982
    %vm674 = vcmp.lt.s32.totalorder %v671, 0
    %v675 = vand.u32 %v671, 2139095040
    %v676 = vshrl.u32 %v675, 23
    %v677 = vsub.s32 %v676, 127
    %v678 = vand.u32 2147483647, %v671
    %v679 = vand.u32 %v678, 8388607
    %v680 = vor.u32 %v679, 8388608
    %v681 = vsub.s32 0, %v680
    %v682 = vadd.s32 %v677, 1
    %vm683 = vcmp.gt.s32.totalorder %v682, 0
    %v684 = vsel %vm683, %v682, 0
    %v685 = vshrl.u32 %v684, 5
    %v686 = vand.u32 %v684, 31
    %v687 = vsub.s32 32, %v686
    %v688 = vshrl.u32 683565275, %v687
    %v689 = vshll.u32 683565275, %v686
    %v690 = vshrl.u32 2475754826, %v687
    %v691 = vor.u32 %v689, %v690
    %v692 = vshll.u32 2475754826, %v686
    %v693 = vshrl.u32 2131351028, %v687
    %v694 = vor.u32 %v692, %v693
    %v695 = vshll.u32 2131351028, %v686
    %v696 = vshrl.u32 2102212464, %v687
    %v697 = vor.u32 %v695, %v696
    %v698 = vshll.u32 2102212464, %v686
    %v699 = vshrl.u32 920167782, %v687
    %v700 = vor.u32 %v698, %v699
    %v701 = vshll.u32 920167782, %v686
    %v702 = vshrl.u32 1326507024, %v687
    %v703 = vor.u32 %v701, %v702
    %vm704 = vcmp.lt.s32.totalorder %v685, 1
    %vm705 = vcmp.lt.s32.totalorder %v685, 2
    %vm706 = vcmp.lt.s32.totalorder %v685, 3
    %vm707 = vcmp.lt.s32.totalorder %v685, 4
    %v708 = vsel %vm704, %v688, %v691
    %v709 = vsel %vm707, %v697, 2102212464
    %v710 = vsel %vm706, %v694, %v709
    %v711 = vsel %vm705, %v708, %v710
    %v712 = vsel %vm704, %v691, %v694
    %v713 = vsel %vm707, %v700, 920167782
    %v714 = vsel %vm706, %v697, %v713
    %v715 = vsel %vm705, %v712, %v714
    %v716 = vsel %vm704, %v694, %v697
    %v717 = vsel %vm707, %v703, 1326507024
    %v718 = vsel %vm706, %v700, %v717
    %v719 = vsel %vm705, %v716, %v718
    %v720 = vshll.u32 %v680, 8
    %v721 = vmul.u32.u64.compose %v720, %v719
    %v722 = vextract.low.u32 %v721
    %v723 = vextract.high.u32 %v721
    %v724 = vmul.u32.u64.compose %v720, %v715
    %v725 = vextract.low.u32 %v724
    %v726 = vextract.high.u32 %v724
    %v727 = vmul.u32 %v720, %v711
    %v728 = vadd.s32 %v723, %v725
    %vm729 = vc.u32 %v723, %v725
    %v730 = vadd.s32 %v726, 1
    %v731 = vsel %vm729, %v730, %v726
    %v732 = vadd.s32 %v727, %v731
    %v733 = vadd.s32 %v732, 536870912
    %v734 = vshrl.u32 %v733, 30
    %v735 = vshll.u32 %v734, 30
    %v736 = vsub.s32 %v732, %v735
    %vm737 = vcmp.lt.s32.totalorder %v736, 0
    %v738 = vsub.s32 0, %v736
    %v739 = vsel %vm737, %v738, %v736
    %v740 = vclz %v739
    %v741 = vsub.s32 %v740, 2
    %vm742 = vcmp.gt.s32.totalorder 0, %v741
    %v743 = vsel %vm742, 0, %v741
    %v744 = vsub.s32 32, %v743
    %v745 = vshll.u32 %v736, %v743
    %v746 = vshrl.u32 %v728, %v744
    %v747 = vor.u32 %v745, %v746
    %v748 = vsub.s32 4294967266, %v743
    %v749 = vadd.s32 %v748, 127
    %v750 = vshll.u32 %v749, 23
    %v751 = vor.u32 4788187, %v750
    %v752 = vand.u32 2147483647, %v751
    %v754 = vcvt.s32.f32 %v747
    %v755 = vmul.f32 %v754, %v752
    %v756 = vxor.u32 %v755, 2147483648
    %v757 = vsel %vm674, %v756, %v755
    %v758 = vsub.s32 4, %v734
    %v759 = vsel %vm674, %v758, %v734
    %v760 = vsel %vm673, %v671, %v757
    %v761 = vsel %vm673, 0, %v759
    %v762 = vcosq.f32.pop %v760
    %v763 = vsinq.f32.pop %v760
    %vm764 = vweird.f32 %v671
    %v765 = vadd.s32 %v761, 3
    %v766 = vand.u32 %v765, 3
    %vm767 = vcmp.lt.s32.totalorder %v766, 2
    %vm768 = vcmp.eq.s32.totalorder %v766, 0
    %v769 = vxor.u32 %v763, 2147483648
    %v770 = vsel %vm768, %v762, %v769
    %vm771 = vcmp.eq.s32.totalorder %v766, 2
    %v772 = vxor.u32 %v762, 2147483648
    %v773 = vsel %vm771, %v772, %v763
    %v774 = vsel %vm767, %v770, %v773
    %v775 = vsel %vm764, nan, %v774
    %v776 = vlaneseq
    %v777 = vshrl.u32 %v776, 7
    %v778 = vsub.s32 0, %v777
    %v779 = vrot.slane %v661, %v778
    %v780 = vmul.f32 %v779, %v775
    %v781 = vadd.f32 %v658, %v780
    %v782 = vld [vmem:[#allocation5 + $0x6] sm:$0x1]
    %v783 = vld [vmem:[#allocation5 + $0xe] sm:$0x1]
    %v784 = vld [vmem:[#allocation5 + $0x16] sm:$0x1]
    %v785 = vlaneseq
    %v786 = vshrl.u32 %v785, 7
    %v787 = vsub.s32 0, %v786
    %v788 = vrot.slane %v782, %v787
    %v789 = vmul.f32 %v788, %v38
    %v790 = vlaneseq
    %v791 = vshrl.u32 %v790, 7
    %v792 = vsub.s32 0, %v791
    %v793 = vrot.slane %v783, %v792
    %v794 = vadd.f32 %v789, %v793
    %v795 = vand.u32 2147483647, %v794
    %vm796 = vcmp.le.f32.partialorder %v795, 0.7853982
    %vm797 = vcmp.lt.s32.totalorder %v794, 0
    %v798 = vand.u32 %v794, 2139095040
    %v799 = vshrl.u32 %v798, 23
    %v800 = vsub.s32 %v799, 127
    %v801 = vand.u32 2147483647, %v794
    %v802 = vand.u32 %v801, 8388607
    %v803 = vor.u32 %v802, 8388608
    %v804 = vsub.s32 0, %v803
    %v805 = vadd.s32 %v800, 1
    %vm806 = vcmp.gt.s32.totalorder %v805, 0
    %v807 = vsel %vm806, %v805, 0
    %v808 = vshrl.u32 %v807, 5
    %v809 = vand.u32 %v807, 31
    %v810 = vsub.s32 32, %v809
    %v811 = vshrl.u32 683565275, %v810
    %v812 = vshll.u32 683565275, %v809
    %v813 = vshrl.u32 2475754826, %v810
    %v814 = vor.u32 %v812, %v813
    %v815 = vshll.u32 2475754826, %v809
    %v816 = vshrl.u32 2131351028, %v810
    %v817 = vor.u32 %v815, %v816
    %v818 = vshll.u32 2131351028, %v809
    %v819 = vshrl.u32 2102212464, %v810
    %v820 = vor.u32 %v818, %v819
    %v821 = vshll.u32 2102212464, %v809
    %v822 = vshrl.u32 920167782, %v810
    %v823 = vor.u32 %v821, %v822
    %v824 = vshll.u32 920167782, %v809
    %v825 = vshrl.u32 1326507024, %v810
    %v826 = vor.u32 %v824, %v825
    %vm827 = vcmp.lt.s32.totalorder %v808, 1
    %vm828 = vcmp.lt.s32.totalorder %v808, 2
    %vm829 = vcmp.lt.s32.totalorder %v808, 3
    %vm830 = vcmp.lt.s32.totalorder %v808, 4
    %v831 = vsel %vm827, %v811, %v814
    %v832 = vsel %vm830, %v820, 2102212464
    %v833 = vsel %vm829, %v817, %v832
    %v834 = vsel %vm828, %v831, %v833
    %v835 = vsel %vm827, %v814, %v817
    %v836 = vsel %vm830, %v823, 920167782
    %v837 = vsel %vm829, %v820, %v836
    %v838 = vsel %vm828, %v835, %v837
    %v839 = vsel %vm827, %v817, %v820
    %v840 = vsel %vm830, %v826, 1326507024
    %v841 = vsel %vm829, %v823, %v840
    %v842 = vsel %vm828, %v839, %v841
    %v843 = vshll.u32 %v803, 8
    %v844 = vmul.u32.u64.compose %v843, %v842
    %v845 = vextract.low.u32 %v844
    %v846 = vextract.high.u32 %v844
    %v847 = vmul.u32.u64.compose %v843, %v838
    %v848 = vextract.low.u32 %v847
    %v849 = vextract.high.u32 %v847
    %v850 = vmul.u32 %v843, %v834
    %v851 = vadd.s32 %v846, %v848
    %vm852 = vc.u32 %v846, %v848
    %v853 = vadd.s32 %v849, 1
    %v854 = vsel %vm852, %v853, %v849
    %v855 = vadd.s32 %v850, %v854
    %v856 = vadd.s32 %v855, 536870912
    %v857 = vshrl.u32 %v856, 30
    %v858 = vshll.u32 %v857, 30
    %v859 = vsub.s32 %v855, %v858
    %vm860 = vcmp.lt.s32.totalorder %v859, 0
    %v861 = vsub.s32 0, %v859
    %v862 = vsel %vm860, %v861, %v859
    %v863 = vclz %v862
    %v864 = vsub.s32 %v863, 2
    %vm865 = vcmp.gt.s32.totalorder 0, %v864
    %v866 = vsel %vm865, 0, %v864
    %v867 = vsub.s32 32, %v866
    %v868 = vshll.u32 %v859, %v866
    %v869 = vshrl.u32 %v851, %v867
    %v870 = vor.u32 %v868, %v869
    %v871 = vsub.s32 4294967266, %v866
    %v872 = vadd.s32 %v871, 127
    %v873 = vshll.u32 %v872, 23
    %v874 = vor.u32 4788187, %v873
    %v875 = vand.u32 2147483647, %v874
    %v877 = vcvt.s32.f32 %v870
    %v878 = vmul.f32 %v877, %v875
    %v879 = vxor.u32 %v878, 2147483648
    %v880 = vsel %vm797, %v879, %v878
    %v881 = vsub.s32 4, %v857
    %v882 = vsel %vm797, %v881, %v857
    %v883 = vsel %vm796, %v794, %v880
    %v884 = vsel %vm796, 0, %v882
    %v885 = vcosq.f32.pop %v883
    %v886 = vsinq.f32.pop %v883
    %vm887 = vweird.f32 %v794
    %v888 = vadd.s32 %v884, 3
    %v889 = vand.u32 %v888, 3
    %vm890 = vcmp.lt.s32.totalorder %v889, 2
    %vm891 = vcmp.eq.s32.totalorder %v889, 0
    %v892 = vxor.u32 %v886, 2147483648
    %v893 = vsel %vm891, %v885, %v892
    %vm894 = vcmp.eq.s32.totalorder %v889, 2
    %v895 = vxor.u32 %v885, 2147483648
    %v896 = vsel %vm894, %v895, %v886
    %v897 = vsel %vm890, %v893, %v896
    %v898 = vsel %vm887, nan, %v897
    %v899 = vlaneseq
    %v900 = vshrl.u32 %v899, 7
    %v901 = vsub.s32 0, %v900
    %v902 = vrot.slane %v784, %v901
    %v903 = vmul.f32 %v902, %v898
    %v904 = vadd.f32 %v781, %v903
    %v905 = vld [vmem:[#allocation5 + $0x7] sm:$0x1]
    %v906 = vld [vmem:[#allocation5 + $0xf] sm:$0x1]
    %v907 = vld [vmem:[#allocation5 + $0x17] sm:$0x1]
    %v908 = vlaneseq
    %v909 = vshrl.u32 %v908, 7
    %v910 = vsub.s32 0, %v909
    %v911 = vrot.slane %v905, %v910
    %v912 = vmul.f32 %v911, %v38
    %v913 = vlaneseq
    %v914 = vshrl.u32 %v913, 7
    %v915 = vsub.s32 0, %v914
    %v916 = vrot.slane %v906, %v915
    %v917 = vadd.f32 %v912, %v916
    %v918 = vand.u32 2147483647, %v917
    %vm919 = vcmp.le.f32.partialorder %v918, 0.7853982
    %vm920 = vcmp.lt.s32.totalorder %v917, 0
    %v921 = vand.u32 %v917, 2139095040
    %v922 = vshrl.u32 %v921, 23
    %v923 = vsub.s32 %v922, 127
    %v924 = vand.u32 2147483647, %v917
    %v925 = vand.u32 %v924, 8388607
    %v926 = vor.u32 %v925, 8388608
    %v927 = vsub.s32 0, %v926
    %v928 = vadd.s32 %v923, 1
    %vm929 = vcmp.gt.s32.totalorder %v928, 0
    %v930 = vsel %vm929, %v928, 0
    %v931 = vshrl.u32 %v930, 5
    %v932 = vand.u32 %v930, 31
    %v933 = vsub.s32 32, %v932
    %v934 = vshrl.u32 683565275, %v933
    %v935 = vshll.u32 683565275, %v932
    %v936 = vshrl.u32 2475754826, %v933
    %v937 = vor.u32 %v935, %v936
    %v938 = vshll.u32 2475754826, %v932
    %v939 = vshrl.u32 2131351028, %v933
    %v940 = vor.u32 %v938, %v939
    %v941 = vshll.u32 2131351028, %v932
    %v942 = vshrl.u32 2102212464, %v933
    %v943 = vor.u32 %v941, %v942
    %v944 = vshll.u32 2102212464, %v932
    %v945 = vshrl.u32 920167782, %v933
    %v946 = vor.u32 %v944, %v945
    %v947 = vshll.u32 920167782, %v932
    %v948 = vshrl.u32 1326507024, %v933
    %v949 = vor.u32 %v947, %v948
    %vm950 = vcmp.lt.s32.totalorder %v931, 1
    %vm951 = vcmp.lt.s32.totalorder %v931, 2
    %vm952 = vcmp.lt.s32.totalorder %v931, 3
    %vm953 = vcmp.lt.s32.totalorder %v931, 4
    %v954 = vsel %vm950, %v934, %v937
    %v955 = vsel %vm953, %v943, 2102212464
    %v956 = vsel %vm952, %v940, %v955
    %v957 = vsel %vm951, %v954, %v956
    %v958 = vsel %vm950, %v937, %v940
    %v959 = vsel %vm953, %v946, 920167782
    %v960 = vsel %vm952, %v943, %v959
    %v961 = vsel %vm951, %v958, %v960
    %v962 = vsel %vm950, %v940, %v943
    %v963 = vsel %vm953, %v949, 1326507024
    %v964 = vsel %vm952, %v946, %v963
    %v965 = vsel %vm951, %v962, %v964
    %v966 = vshll.u32 %v926, 8
    %v967 = vmul.u32.u64.compose %v966, %v965
    %v968 = vextract.low.u32 %v967
    %v969 = vextract.high.u32 %v967
    %v970 = vmul.u32.u64.compose %v966, %v961
    %v971 = vextract.low.u32 %v970
    %v972 = vextract.high.u32 %v970
    %v973 = vmul.u32 %v966, %v957
    %v974 = vadd.s32 %v969, %v971
    %vm975 = vc.u32 %v969, %v971
    %v976 = vadd.s32 %v972, 1
    %v977 = vsel %vm975, %v976, %v972
    %v978 = vadd.s32 %v973, %v977
    %v979 = vadd.s32 %v978, 536870912
    %v980 = vshrl.u32 %v979, 30
    %v981 = vshll.u32 %v980, 30
    %v982 = vsub.s32 %v978, %v981
    %vm983 = vcmp.lt.s32.totalorder %v982, 0
    %v984 = vsub.s32 0, %v982
    %v985 = vsel %vm983, %v984, %v982
    %v986 = vclz %v985
    %v987 = vsub.s32 %v986, 2
    %vm988 = vcmp.gt.s32.totalorder 0, %v987
    %v989 = vsel %vm988, 0, %v987
    %v990 = vsub.s32 32, %v989
    %v991 = vshll.u32 %v982, %v989
    %v992 = vshrl.u32 %v974, %v990
    %v993 = vor.u32 %v991, %v992
    %v994 = vsub.s32 4294967266, %v989
    %v995 = vadd.s32 %v994, 127
    %v996 = vshll.u32 %v995, 23
    %v997 = vor.u32 4788187, %v996
    %v998 = vand.u32 2147483647, %v997
    %v1000 = vcvt.s32.f32 %v993
    %v1001 = vmul.f32 %v1000, %v998
    %v1002 = vxor.u32 %v1001, 2147483648
    %v1003 = vsel %vm920, %v1002, %v1001
    %v1004 = vsub.s32 4, %v980
    %v1005 = vsel %vm920, %v1004, %v980
    %v1006 = vsel %vm919, %v917, %v1003
    %v1007 = vsel %vm919, 0, %v1005
    %v1008 = vcosq.f32.pop %v1006
    %v1009 = vsinq.f32.pop %v1006
    %vm1010 = vweird.f32 %v917
    %v1011 = vadd.s32 %v1007, 3
    %v1012 = vand.u32 %v1011, 3
    %vm1013 = vcmp.lt.s32.totalorder %v1012, 2
    %vm1014 = vcmp.eq.s32.totalorder %v1012, 0
    %v1015 = vxor.u32 %v1009, 2147483648
    %v1016 = vsel %vm1014, %v1008, %v1015
    %vm1017 = vcmp.eq.s32.totalorder %v1012, 2
    %v1018 = vxor.u32 %v1008, 2147483648
    %v1019 = vsel %vm1017, %v1018, %v1009
    %v1020 = vsel %vm1013, %v1016, %v1019
    %v1021 = vsel %vm1010, nan, %v1020
    %v1022 = vlaneseq
    %v1023 = vshrl.u32 %v1022, 7
    %v1024 = vsub.s32 0, %v1023
    %v1025 = vrot.slane %v907, %v1024
    %v1026 = vmul.f32 %v1025, %v1021
    %v1027 = vadd.f32 %v904, %v1026
    %1028 = vst [vmem:[#allocation7] sm:$0x3] %v1027
    // Predicated region
    $region18: #{tpu_custom_call.1} parent=1 // pred_check
      _
    $region19: #{tpu_custom_call.1} parent=1 // pred_check_branch
      %1030 = sbr.rel (0) target = $region21
    $region20: #{tpu_custom_call.1} parent=1 // pred_region
      %s1032 = ssub.s32 32, 32
      %1033 = vsyncadd [#allocation4], %s1032
      %s1035 = sshll.u32 [#allocation7], 4
      %s1036 = int_to_ptr.vmem [resolvable:$true] %s1035
      %1038 = dma.vmem_to_hbm [thread:$0]  %s1036, 32, %s2, [#allocation4]
    $region21: #{tpu_custom_call.1} parent=1 // pred_fallthru
      _
    // Predicated region
    $region22: #{tpu_custom_call.1} parent=1 // pred_check
      _
    $region23: #{tpu_custom_call.1} parent=1 // pred_check_branch
      %1040 = sbr.rel (0) target = $region25
    $region24: #{tpu_custom_call.1} parent=1 // pred_region
      %1041 = dma.done [#allocation4], 32
    $region25: #{tpu_custom_call.1} parent=1 // pred_fallthru
      _
    %1042 = vsyncpa [#allocation3], 1
    %1043 = vsyncpa [#allocation6], 1
    %1044 = vsyncpa [#allocation4], 1

// kernel: tpu_custom_call.1
$region0: #{tpu_custom_call.1}
  #allocation0 [shape = 'u32[]', space=smem, size = 0x4, offset = 0x4, fixed_abs, tag = 'smem constant byte address 0x4 - core index']
  #allocation1 [shape = 'u32[144,128]{1,0:T(1,128)}', space=vmem, size = 0x12000, scoped, tag = 'internal scratch']
  %s0 = inlined_call_operand.hbm [shape: f32[2,128], index: 0, kind: input, shape index: {}]
  %s1 = inlined_call_operand.hbm [shape: f32[25,128], index: 1, kind: input, shape index: {}]
  %s2 = inlined_call_operand.hbm [shape: f32[2,128], index: 2, kind: output, shape index: {}]
  %s3 = sld [smem:[#allocation0]]
  $region26: #{tpu_custom_call.1} parent=0
    _
  %s5 = ssub.s32 1, %s3
  %s6 = scalar_select 0, %s5, %s3
  $region1: #{tpu_custom_call.1} parent=0
    #allocation2 [shape = 'u8[1024]{0}', space=vmem, size = 0x400, scoped, tag = 'input window, operand 0, single buffered']
    #allocation3 [shape = 's32[1]{0}', space=sflag, size = 0x4, scoped, tag = 'scoped memory for tpu_custom_call.1']
    #allocation4 [shape = 's32[1]{0}', space=sflag, size = 0x4, scoped, tag = 'scoped memory for tpu_custom_call.1']
    #allocation5 [shape = 'u8[16384]{0}', space=vmem, size = 0x4000, scoped, tag = 'input window, operand 1, single buffered']
    #allocation6 [shape = 's32[1]{0}', space=sflag, size = 0x4, scoped, tag = 'scoped memory for tpu_custom_call.1']
    #allocation7 [shape = 'u8[1024]{0}', space=vmem, size = 0x400, scoped, tag = 'output window, operand 0, single buffered']
    %7 = vsyncpa [#allocation3], 0
    %8 = vsyncpa [#allocation6], 0
    %9 = vsyncpa [#allocation4], 0
    // Predicated region
    $region2: #{tpu_custom_call.1} parent=1 // pred_check
      _
    $region3: #{tpu_custom_call.1} parent=1 // pred_check_branch
      %11 = sbr.rel (0) target = $region5
    $region4: #{tpu_custom_call.1} parent=1 // pred_region
      %s13 = ssub.s32 32, 32
      %14 = vsyncadd [#allocation3], %s13
      %s16 = sshll.u32 [#allocation2], 4
      %s17 = int_to_ptr.vmem [resolvable:$true] %s16
      %19 = dma.hbm_to_vmem [thread:$0]  %s0, 32, %s17, [#allocation3]
    $region5: #{tpu_custom_call.1} parent=1 // pred_fallthru
      _
    // Predicated region
    $region6: #{tpu_custom_call.1} parent=1 // pred_check
      _
    $region7: #{tpu_custom_call.1} parent=1 // pred_check_branch
      %21 = sbr.rel (0) target = $region9
    $region8: #{tpu_custom_call.1} parent=1 // pred_region
      %s23 = ssub.s32 512, 512
      %24 = vsyncadd [#allocation6], %s23
      %s25 = sshll.u32 [#allocation5], 4
      %s26 = int_to_ptr.vmem [resolvable:$true] %s25
      %31 = dma.hbm_to_vmem [thread:$0]  %s1, 512, %s26, [#allocation6], 128, 128, 8
    $region9: #{tpu_custom_call.1} parent=1 // pred_fallthru
      _
    // Predicated region
    $region10: #{tpu_custom_call.1} parent=1 // pred_check
      _
    $region11: #{tpu_custom_call.1} parent=1 // pred_check_branch
      %33 = sbr.rel (0) target = $region13
    $region12: #{tpu_custom_call.1} parent=1 // pred_region
      %34 = dma.done [#allocation3], 32
    $region13: #{tpu_custom_call.1} parent=1 // pred_fallthru
      _
    // Predicated region
    $region14: #{tpu_custom_call.1} parent=1 // pred_check
      _
    $region15: #{tpu_custom_call.1} parent=1 // pred_check_branch
      %36 = sbr.rel (0) target = $region17
    $region16: #{tpu_custom_call.1} parent=1 // pred_region
      %37 = dma.done [#allocation6], 512
    $region17: #{tpu_custom_call.1} parent=1 // pred_fallthru
      _
    %v38 = vld [vmem:[#allocation2] sm:$0x3]
    %v39 = vld [vmem:[#allocation5 + $0x18] sm:$0x1]
    %v40 = vlaneseq
    %v41 = vshrl.u32 %v40, 7
    %v42 = vsub.s32 0, %v41
    %v43 = vrot.slane %v39, %v42
    %v44 = vld [vmem:[#allocation5] sm:$0x1]
    %v45 = vld [vmem:[#allocation5 + $0x8] sm:$0x1]
    %v46 = vld [vmem:[#allocation5 + $0x10] sm:$0x1]
    %v47 = vlaneseq
    %v48 = vshrl.u32 %v47, 7
    %v49 = vsub.s32 0, %v48
    %v50 = vrot.slane %v44, %v49
    %v51 = vmul.f32 %v50, %v38
    %v52 = vlaneseq
    %v53 = vshrl.u32 %v52, 7
    %v54 = vsub.s32 0, %v53
    %v55 = vrot.slane %v45, %v54
    %v56 = vadd.f32 %v51, %v55
    %v57 = vand.u32 2147483647, %v56
    %vm58 = vcmp.le.f32.partialorder %v57, 0.7853982
    %vm59 = vcmp.lt.s32.totalorder %v56, 0
    %v60 = vand.u32 %v56, 2139095040
    %v61 = vshrl.u32 %v60, 23
    %v62 = vsub.s32 %v61, 127
    %v63 = vand.u32 2147483647, %v56
    %v64 = vand.u32 %v63, 8388607
    %v65 = vor.u32 %v64, 8388608
    %v66 = vsub.s32 0, %v65
    %v67 = vadd.s32 %v62, 1
    %vm68 = vcmp.gt.s32.totalorder %v67, 0
    %v69 = vsel %vm68, %v67, 0
    %v70 = vshrl.u32 %v69, 5
    %v71 = vand.u32 %v69, 31
    %v72 = vsub.s32 32, %v71
    %v73 = vshrl.u32 683565275, %v72
    %v74 = vshll.u32 683565275, %v71
    %v75 = vshrl.u32 2475754826, %v72
    %v76 = vor.u32 %v74, %v75
    %v77 = vshll.u32 2475754826, %v71
    %v78 = vshrl.u32 2131351028, %v72
    %v79 = vor.u32 %v77, %v78
    %v80 = vshll.u32 2131351028, %v71
    %v81 = vshrl.u32 2102212464, %v72
    %v82 = vor.u32 %v80, %v81
    %v83 = vshll.u32 2102212464, %v71
    %v84 = vshrl.u32 920167782, %v72
    %v85 = vor.u32 %v83, %v84
    %v86 = vshll.u32 920167782, %v71
    %v87 = vshrl.u32 1326507024, %v72
    %v88 = vor.u32 %v86, %v87
    %vm89 = vcmp.lt.s32.totalorder %v70, 1
    %vm90 = vcmp.lt.s32.totalorder %v70, 2
    %vm91 = vcmp.lt.s32.totalorder %v70, 3
    %vm92 = vcmp.lt.s32.totalorder %v70, 4
    %v93 = vsel %vm89, %v73, %v76
    %v94 = vsel %vm92, %v82, 2102212464
    %v95 = vsel %vm91, %v79, %v94
    %v96 = vsel %vm90, %v93, %v95
    %v97 = vsel %vm89, %v76, %v79
    %v98 = vsel %vm92, %v85, 920167782
    %v99 = vsel %vm91, %v82, %v98
    %v100 = vsel %vm90, %v97, %v99
    %v101 = vsel %vm89, %v79, %v82
    %v102 = vsel %vm92, %v88, 1326507024
    %v103 = vsel %vm91, %v85, %v102
    %v104 = vsel %vm90, %v101, %v103
    %v105 = vshll.u32 %v65, 8
    %v106 = vmul.u32.u64.compose %v105, %v104
    %v107 = vextract.low.u32 %v106
    %v108 = vextract.high.u32 %v106
    %v109 = vmul.u32.u64.compose %v105, %v100
    %v110 = vextract.low.u32 %v109
    %v111 = vextract.high.u32 %v109
    %v112 = vmul.u32 %v105, %v96
    %v113 = vadd.s32 %v108, %v110
    %vm114 = vc.u32 %v108, %v110
    %v115 = vadd.s32 %v111, 1
    %v116 = vsel %vm114, %v115, %v111
    %v117 = vadd.s32 %v112, %v116
    %v118 = vadd.s32 %v117, 536870912
    %v119 = vshrl.u32 %v118, 30
    %v120 = vshll.u32 %v119, 30
    %v121 = vsub.s32 %v117, %v120
    %vm122 = vcmp.lt.s32.totalorder %v121, 0
    %v123 = vsub.s32 0, %v121
    %v124 = vsel %vm122, %v123, %v121
    %v125 = vclz %v124
    %v126 = vsub.s32 %v125, 2
    %vm127 = vcmp.gt.s32.totalorder 0, %v126
    %v128 = vsel %vm127, 0, %v126
    %v129 = vsub.s32 32, %v128
    %v130 = vshll.u32 %v121, %v128
    %v131 = vshrl.u32 %v113, %v129
    %v132 = vor.u32 %v130, %v131
    %v133 = vsub.s32 4294967266, %v128
    %v134 = vadd.s32 %v133, 127
    %v135 = vshll.u32 %v134, 23
    %v136 = vor.u32 4788187, %v135
    %v137 = vand.u32 2147483647, %v136
    %v139 = vcvt.s32.f32 %v132
    %v140 = vmul.f32 %v139, %v137
    %v141 = vxor.u32 %v140, 2147483648
    %v142 = vsel %vm59, %v141, %v140
    %v143 = vsub.s32 4, %v119
    %v144 = vsel %vm59, %v143, %v119
    %v145 = vsel %vm58, %v56, %v142
    %v146 = vsel %vm58, 0, %v144
    %v147 = vcosq.f32.pop %v145
    %v148 = vsinq.f32.pop %v145
    %vm149 = vweird.f32 %v56
    %v150 = vadd.s32 %v146, 3
    %v151 = vand.u32 %v150, 3
    %vm152 = vcmp.lt.s32.totalorder %v151, 2
    %vm153 = vcmp.eq.s32.totalorder %v151, 0
    %v154 = vxor.u32 %v148, 2147483648
    %v155 = vsel %vm153, %v147, %v154
    %vm156 = vcmp.eq.s32.totalorder %v151, 2
    %v157 = vxor.u32 %v147, 2147483648
    %v158 = vsel %vm156, %v157, %v148
    %v159 = vsel %vm152, %v155, %v158
    %v160 = vsel %vm149, nan, %v159
    %v161 = vlaneseq
    %v162 = vshrl.u32 %v161, 7
    %v163 = vsub.s32 0, %v162
    %v164 = vrot.slane %v46, %v163
    %v165 = vmul.f32 %v164, %v160
    %v166 = vadd.f32 %v43, %v165
    %v167 = vld [vmem:[#allocation5 + $0x1] sm:$0x1]
    %v168 = vld [vmem:[#allocation5 + $0x9] sm:$0x1]
    %v169 = vld [vmem:[#allocation5 + $0x11] sm:$0x1]
    %v170 = vlaneseq
    %v171 = vshrl.u32 %v170, 7
    %v172 = vsub.s32 0, %v171
    %v173 = vrot.slane %v167, %v172
    %v174 = vmul.f32 %v173, %v38
    %v175 = vlaneseq
    %v176 = vshrl.u32 %v175, 7
    %v177 = vsub.s32 0, %v176
    %v178 = vrot.slane %v168, %v177
    %v179 = vadd.f32 %v174, %v178
    %v180 = vand.u32 2147483647, %v179
    %vm181 = vcmp.le.f32.partialorder %v180, 0.7853982
    %vm182 = vcmp.lt.s32.totalorder %v179, 0
    %v183 = vand.u32 %v179, 2139095040
    %v184 = vshrl.u32 %v183, 23
    %v185 = vsub.s32 %v184, 127
    %v186 = vand.u32 2147483647, %v179
    %v187 = vand.u32 %v186, 8388607
    %v188 = vor.u32 %v187, 8388608
    %v189 = vsub.s32 0, %v188
    %v190 = vadd.s32 %v185, 1
    %vm191 = vcmp.gt.s32.totalorder %v190, 0
    %v192 = vsel %vm191, %v190, 0
    %v193 = vshrl.u32 %v192, 5
    %v194 = vand.u32 %v192, 31
    %v195 = vsub.s32 32, %v194
    %v196 = vshrl.u32 683565275, %v195
    %v197 = vshll.u32 683565275, %v194
    %v198 = vshrl.u32 2475754826, %v195
    %v199 = vor.u32 %v197, %v198
    %v200 = vshll.u32 2475754826, %v194
    %v201 = vshrl.u32 2131351028, %v195
    %v202 = vor.u32 %v200, %v201
    %v203 = vshll.u32 2131351028, %v194
    %v204 = vshrl.u32 2102212464, %v195
    %v205 = vor.u32 %v203, %v204
    %v206 = vshll.u32 2102212464, %v194
    %v207 = vshrl.u32 920167782, %v195
    %v208 = vor.u32 %v206, %v207
    %v209 = vshll.u32 920167782, %v194
    %v210 = vshrl.u32 1326507024, %v195
    %v211 = vor.u32 %v209, %v210
    %vm212 = vcmp.lt.s32.totalorder %v193, 1
    %vm213 = vcmp.lt.s32.totalorder %v193, 2
    %vm214 = vcmp.lt.s32.totalorder %v193, 3
    %vm215 = vcmp.lt.s32.totalorder %v193, 4
    %v216 = vsel %vm212, %v196, %v199
    %v217 = vsel %vm215, %v205, 2102212464
    %v218 = vsel %vm214, %v202, %v217
    %v219 = vsel %vm213, %v216, %v218
    %v220 = vsel %vm212, %v199, %v202
    %v221 = vsel %vm215, %v208, 920167782
    %v222 = vsel %vm214, %v205, %v221
    %v223 = vsel %vm213, %v220, %v222
    %v224 = vsel %vm212, %v202, %v205
    %v225 = vsel %vm215, %v211, 1326507024
    %v226 = vsel %vm214, %v208, %v225
    %v227 = vsel %vm213, %v224, %v226
    %v228 = vshll.u32 %v188, 8
    %v229 = vmul.u32.u64.compose %v228, %v227
    %v230 = vextract.low.u32 %v229
    %v231 = vextract.high.u32 %v229
    %v232 = vmul.u32.u64.compose %v228, %v223
    %v233 = vextract.low.u32 %v232
    %v234 = vextract.high.u32 %v232
    %v235 = vmul.u32 %v228, %v219
    %v236 = vadd.s32 %v231, %v233
    %vm237 = vc.u32 %v231, %v233
    %v238 = vadd.s32 %v234, 1
    %v239 = vsel %vm237, %v238, %v234
    %v240 = vadd.s32 %v235, %v239
    %v241 = vadd.s32 %v240, 536870912
    %v242 = vshrl.u32 %v241, 30
    %v243 = vshll.u32 %v242, 30
    %v244 = vsub.s32 %v240, %v243
    %vm245 = vcmp.lt.s32.totalorder %v244, 0
    %v246 = vsub.s32 0, %v244
    %v247 = vsel %vm245, %v246, %v244
    %v248 = vclz %v247
    %v249 = vsub.s32 %v248, 2
    %vm250 = vcmp.gt.s32.totalorder 0, %v249
    %v251 = vsel %vm250, 0, %v249
    %v252 = vsub.s32 32, %v251
    %v253 = vshll.u32 %v244, %v251
    %v254 = vshrl.u32 %v236, %v252
    %v255 = vor.u32 %v253, %v254
    %v256 = vsub.s32 4294967266, %v251
    %v257 = vadd.s32 %v256, 127
    %v258 = vshll.u32 %v257, 23
    %v259 = vor.u32 4788187, %v258
    %v260 = vand.u32 2147483647, %v259
    %v262 = vcvt.s32.f32 %v255
    %v263 = vmul.f32 %v262, %v260
    %v264 = vxor.u32 %v263, 2147483648
    %v265 = vsel %vm182, %v264, %v263
    %v266 = vsub.s32 4, %v242
    %v267 = vsel %vm182, %v266, %v242
    %v268 = vsel %vm181, %v179, %v265
    %v269 = vsel %vm181, 0, %v267
    %v270 = vcosq.f32.pop %v268
    %v271 = vsinq.f32.pop %v268
    %vm272 = vweird.f32 %v179
    %v273 = vadd.s32 %v269, 3
    %v274 = vand.u32 %v273, 3
    %vm275 = vcmp.lt.s32.totalorder %v274, 2
    %vm276 = vcmp.eq.s32.totalorder %v274, 0
    %v277 = vxor.u32 %v271, 2147483648
    %v278 = vsel %vm276, %v270, %v277
    %vm279 = vcmp.eq.s32.totalorder %v274, 2
    %v280 = vxor.u32 %v270, 2147483648
    %v281 = vsel %vm279, %v280, %v271
    %v282 = vsel %vm275, %v278, %v281
    %v283 = vsel %vm272, nan, %v282
    %v284 = vlaneseq
    %v285 = vshrl.u32 %v284, 7
    %v286 = vsub.s32 0, %v285
    %v287 = vrot.slane %v169, %v286
    %v288 = vmul.f32 %v287, %v283
    %v289 = vadd.f32 %v166, %v288
    %v290 = vld [vmem:[#allocation5 + $0x2] sm:$0x1]
    %v291 = vld [vmem:[#allocation5 + $0xa] sm:$0x1]
    %v292 = vld [vmem:[#allocation5 + $0x12] sm:$0x1]
    %v293 = vlaneseq
    %v294 = vshrl.u32 %v293, 7
    %v295 = vsub.s32 0, %v294
    %v296 = vrot.slane %v290, %v295
    %v297 = vmul.f32 %v296, %v38
    %v298 = vlaneseq
    %v299 = vshrl.u32 %v298, 7
    %v300 = vsub.s32 0, %v299
    %v301 = vrot.slane %v291, %v300
    %v302 = vadd.f32 %v297, %v301
    %v303 = vand.u32 2147483647, %v302
    %vm304 = vcmp.le.f32.partialorder %v303, 0.7853982
    %vm305 = vcmp.lt.s32.totalorder %v302, 0
    %v306 = vand.u32 %v302, 2139095040
    %v307 = vshrl.u32 %v306, 23
    %v308 = vsub.s32 %v307, 127
    %v309 = vand.u32 2147483647, %v302
    %v310 = vand.u32 %v309, 8388607
    %v311 = vor.u32 %v310, 8388608
    %v312 = vsub.s32 0, %v311
    %v313 = vadd.s32 %v308, 1
    %vm314 = vcmp.gt.s32.totalorder %v313, 0
    %v315 = vsel %vm314, %v313, 0
    %v316 = vshrl.u32 %v315, 5
    %v317 = vand.u32 %v315, 31
    %v318 = vsub.s32 32, %v317
    %v319 = vshrl.u32 683565275, %v318
    %v320 = vshll.u32 683565275, %v317
    %v321 = vshrl.u32 2475754826, %v318
    %v322 = vor.u32 %v320, %v321
    %v323 = vshll.u32 2475754826, %v317
    %v324 = vshrl.u32 2131351028, %v318
    %v325 = vor.u32 %v323, %v324
    %v326 = vshll.u32 2131351028, %v317
    %v327 = vshrl.u32 2102212464, %v318
    %v328 = vor.u32 %v326, %v327
    %v329 = vshll.u32 2102212464, %v317
    %v330 = vshrl.u32 920167782, %v318
    %v331 = vor.u32 %v329, %v330
    %v332 = vshll.u32 920167782, %v317
    %v333 = vshrl.u32 1326507024, %v318
    %v334 = vor.u32 %v332, %v333
    %vm335 = vcmp.lt.s32.totalorder %v316, 1
    %vm336 = vcmp.lt.s32.totalorder %v316, 2
    %vm337 = vcmp.lt.s32.totalorder %v316, 3
    %vm338 = vcmp.lt.s32.totalorder %v316, 4
    %v339 = vsel %vm335, %v319, %v322
    %v340 = vsel %vm338, %v328, 2102212464
    %v341 = vsel %vm337, %v325, %v340
    %v342 = vsel %vm336, %v339, %v341
    %v343 = vsel %vm335, %v322, %v325
    %v344 = vsel %vm338, %v331, 920167782
    %v345 = vsel %vm337, %v328, %v344
    %v346 = vsel %vm336, %v343, %v345
    %v347 = vsel %vm335, %v325, %v328
    %v348 = vsel %vm338, %v334, 1326507024
    %v349 = vsel %vm337, %v331, %v348
    %v350 = vsel %vm336, %v347, %v349
    %v351 = vshll.u32 %v311, 8
    %v352 = vmul.u32.u64.compose %v351, %v350
    %v353 = vextract.low.u32 %v352
    %v354 = vextract.high.u32 %v352
    %v355 = vmul.u32.u64.compose %v351, %v346
    %v356 = vextract.low.u32 %v355
    %v357 = vextract.high.u32 %v355
    %v358 = vmul.u32 %v351, %v342
    %v359 = vadd.s32 %v354, %v356
    %vm360 = vc.u32 %v354, %v356
    %v361 = vadd.s32 %v357, 1
    %v362 = vsel %vm360, %v361, %v357
    %v363 = vadd.s32 %v358, %v362
    %v364 = vadd.s32 %v363, 536870912
    %v365 = vshrl.u32 %v364, 30
    %v366 = vshll.u32 %v365, 30
    %v367 = vsub.s32 %v363, %v366
    %vm368 = vcmp.lt.s32.totalorder %v367, 0
    %v369 = vsub.s32 0, %v367
    %v370 = vsel %vm368, %v369, %v367
    %v371 = vclz %v370
    %v372 = vsub.s32 %v371, 2
    %vm373 = vcmp.gt.s32.totalorder 0, %v372
    %v374 = vsel %vm373, 0, %v372
    %v375 = vsub.s32 32, %v374
    %v376 = vshll.u32 %v367, %v374
    %v377 = vshrl.u32 %v359, %v375
    %v378 = vor.u32 %v376, %v377
    %v379 = vsub.s32 4294967266, %v374
    %v380 = vadd.s32 %v379, 127
    %v381 = vshll.u32 %v380, 23
    %v382 = vor.u32 4788187, %v381
    %v383 = vand.u32 2147483647, %v382
    %v385 = vcvt.s32.f32 %v378
    %v386 = vmul.f32 %v385, %v383
    %v387 = vxor.u32 %v386, 2147483648
    %v388 = vsel %vm305, %v387, %v386
    %v389 = vsub.s32 4, %v365
    %v390 = vsel %vm305, %v389, %v365
    %v391 = vsel %vm304, %v302, %v388
    %v392 = vsel %vm304, 0, %v390
    %v393 = vcosq.f32.pop %v391
    %v394 = vsinq.f32.pop %v391
    %vm395 = vweird.f32 %v302
    %v396 = vadd.s32 %v392, 3
    %v397 = vand.u32 %v396, 3
    %vm398 = vcmp.lt.s32.totalorder %v397, 2
    %vm399 = vcmp.eq.s32.totalorder %v397, 0
    %v400 = vxor.u32 %v394, 2147483648
    %v401 = vsel %vm399, %v393, %v400
    %vm402 = vcmp.eq.s32.totalorder %v397, 2
    %v403 = vxor.u32 %v393, 2147483648
    %v404 = vsel %vm402, %v403, %v394
    %v405 = vsel %vm398, %v401, %v404
    %v406 = vsel %vm395, nan, %v405
    %v407 = vlaneseq
    %v408 = vshrl.u32 %v407, 7
    %v409 = vsub.s32 0, %v408
    %v410 = vrot.slane %v292, %v409
    %v411 = vmul.f32 %v410, %v406
    %v412 = vadd.f32 %v289, %v411
    %v413 = vld [vmem:[#allocation5 + $0x3] sm:$0x1]
    %v414 = vld [vmem:[#allocation5 + $0xb] sm:$0x1]
    %v415 = vld [vmem:[#allocation5 + $0x13] sm:$0x1]
    %v416 = vlaneseq
    %v417 = vshrl.u32 %v416, 7
    %v418 = vsub.s32 0, %v417
    %v419 = vrot.slane %v413, %v418
    %v420 = vmul.f32 %v419, %v38
    %v421 = vlaneseq
    %v422 = vshrl.u32 %v421, 7
    %v423 = vsub.s32 0, %v422
    %v424 = vrot.slane %v414, %v423
    %v425 = vadd.f32 %v420, %v424
    %v426 = vand.u32 2147483647, %v425
    %vm427 = vcmp.le.f32.partialorder %v426, 0.7853982
    %vm428 = vcmp.lt.s32.totalorder %v425, 0
    %v429 = vand.u32 %v425, 2139095040
    %v430 = vshrl.u32 %v429, 23
    %v431 = vsub.s32 %v430, 127
    %v432 = vand.u32 2147483647, %v425
    %v433 = vand.u32 %v432, 8388607
    %v434 = vor.u32 %v433, 8388608
    %v435 = vsub.s32 0, %v434
    %v436 = vadd.s32 %v431, 1
    %vm437 = vcmp.gt.s32.totalorder %v436, 0
    %v438 = vsel %vm437, %v436, 0
    %v439 = vshrl.u32 %v438, 5
    %v440 = vand.u32 %v438, 31
    %v441 = vsub.s32 32, %v440
    %v442 = vshrl.u32 683565275, %v441
    %v443 = vshll.u32 683565275, %v440
    %v444 = vshrl.u32 2475754826, %v441
    %v445 = vor.u32 %v443, %v444
    %v446 = vshll.u32 2475754826, %v440
    %v447 = vshrl.u32 2131351028, %v441
    %v448 = vor.u32 %v446, %v447
    %v449 = vshll.u32 2131351028, %v440
    %v450 = vshrl.u32 2102212464, %v441
    %v451 = vor.u32 %v449, %v450
    %v452 = vshll.u32 2102212464, %v440
    %v453 = vshrl.u32 920167782, %v441
    %v454 = vor.u32 %v452, %v453
    %v455 = vshll.u32 920167782, %v440
    %v456 = vshrl.u32 1326507024, %v441
    %v457 = vor.u32 %v455, %v456
    %vm458 = vcmp.lt.s32.totalorder %v439, 1
    %vm459 = vcmp.lt.s32.totalorder %v439, 2
    %vm460 = vcmp.lt.s32.totalorder %v439, 3
    %vm461 = vcmp.lt.s32.totalorder %v439, 4
    %v462 = vsel %vm458, %v442, %v445
    %v463 = vsel %vm461, %v451, 2102212464
    %v464 = vsel %vm460, %v448, %v463
    %v465 = vsel %vm459, %v462, %v464
    %v466 = vsel %vm458, %v445, %v448
    %v467 = vsel %vm461, %v454, 920167782
    %v468 = vsel %vm460, %v451, %v467
    %v469 = vsel %vm459, %v466, %v468
    %v470 = vsel %vm458, %v448, %v451
    %v471 = vsel %vm461, %v457, 1326507024
    %v472 = vsel %vm460, %v454, %v471
    %v473 = vsel %vm459, %v470, %v472
    %v474 = vshll.u32 %v434, 8
    %v475 = vmul.u32.u64.compose %v474, %v473
    %v476 = vextract.low.u32 %v475
    %v477 = vextract.high.u32 %v475
    %v478 = vmul.u32.u64.compose %v474, %v469
    %v479 = vextract.low.u32 %v478
    %v480 = vextract.high.u32 %v478
    %v481 = vmul.u32 %v474, %v465
    %v482 = vadd.s32 %v477, %v479
    %vm483 = vc.u32 %v477, %v479
    %v484 = vadd.s32 %v480, 1
    %v485 = vsel %vm483, %v484, %v480
    %v486 = vadd.s32 %v481, %v485
    %v487 = vadd.s32 %v486, 536870912
    %v488 = vshrl.u32 %v487, 30
    %v489 = vshll.u32 %v488, 30
    %v490 = vsub.s32 %v486, %v489
    %vm491 = vcmp.lt.s32.totalorder %v490, 0
    %v492 = vsub.s32 0, %v490
    %v493 = vsel %vm491, %v492, %v490
    %v494 = vclz %v493
    %v495 = vsub.s32 %v494, 2
    %vm496 = vcmp.gt.s32.totalorder 0, %v495
    %v497 = vsel %vm496, 0, %v495
    %v498 = vsub.s32 32, %v497
    %v499 = vshll.u32 %v490, %v497
    %v500 = vshrl.u32 %v482, %v498
    %v501 = vor.u32 %v499, %v500
    %v502 = vsub.s32 4294967266, %v497
    %v503 = vadd.s32 %v502, 127
    %v504 = vshll.u32 %v503, 23
    %v505 = vor.u32 4788187, %v504
    %v506 = vand.u32 2147483647, %v505
    %v508 = vcvt.s32.f32 %v501
    %v509 = vmul.f32 %v508, %v506
    %v510 = vxor.u32 %v509, 2147483648
    %v511 = vsel %vm428, %v510, %v509
    %v512 = vsub.s32 4, %v488
    %v513 = vsel %vm428, %v512, %v488
    %v514 = vsel %vm427, %v425, %v511
    %v515 = vsel %vm427, 0, %v513
    %v516 = vcosq.f32.pop %v514
    %v517 = vsinq.f32.pop %v514
    %vm518 = vweird.f32 %v425
    %v519 = vadd.s32 %v515, 3
    %v520 = vand.u32 %v519, 3
    %vm521 = vcmp.lt.s32.totalorder %v520, 2
    %vm522 = vcmp.eq.s32.totalorder %v520, 0
    %v523 = vxor.u32 %v517, 2147483648
    %v524 = vsel %vm522, %v516, %v523
    %vm525 = vcmp.eq.s32.totalorder %v520, 2
    %v526 = vxor.u32 %v516, 2147483648
    %v527 = vsel %vm525, %v526, %v517
    %v528 = vsel %vm521, %v524, %v527
    %v529 = vsel %vm518, nan, %v528
    %v530 = vlaneseq
    %v531 = vshrl.u32 %v530, 7
    %v532 = vsub.s32 0, %v531
    %v533 = vrot.slane %v415, %v532
    %v534 = vmul.f32 %v533, %v529
    %v535 = vadd.f32 %v412, %v534
    %v536 = vld [vmem:[#allocation5 + $0x4] sm:$0x1]
    %v537 = vld [vmem:[#allocation5 + $0xc] sm:$0x1]
    %v538 = vld [vmem:[#allocation5 + $0x14] sm:$0x1]
    %v539 = vlaneseq
    %v540 = vshrl.u32 %v539, 7
    %v541 = vsub.s32 0, %v540
    %v542 = vrot.slane %v536, %v541
    %v543 = vmul.f32 %v542, %v38
    %v544 = vlaneseq
    %v545 = vshrl.u32 %v544, 7
    %v546 = vsub.s32 0, %v545
    %v547 = vrot.slane %v537, %v546
    %v548 = vadd.f32 %v543, %v547
    %v549 = vand.u32 2147483647, %v548
    %vm550 = vcmp.le.f32.partialorder %v549, 0.7853982
    %vm551 = vcmp.lt.s32.totalorder %v548, 0
    %v552 = vand.u32 %v548, 2139095040
    %v553 = vshrl.u32 %v552, 23
    %v554 = vsub.s32 %v553, 127
    %v555 = vand.u32 2147483647, %v548
    %v556 = vand.u32 %v555, 8388607
    %v557 = vor.u32 %v556, 8388608
    %v558 = vsub.s32 0, %v557
    %v559 = vadd.s32 %v554, 1
    %vm560 = vcmp.gt.s32.totalorder %v559, 0
    %v561 = vsel %vm560, %v559, 0
    %v562 = vshrl.u32 %v561, 5
    %v563 = vand.u32 %v561, 31
    %v564 = vsub.s32 32, %v563
    %v565 = vshrl.u32 683565275, %v564
    %v566 = vshll.u32 683565275, %v563
    %v567 = vshrl.u32 2475754826, %v564
    %v568 = vor.u32 %v566, %v567
    %v569 = vshll.u32 2475754826, %v563
    %v570 = vshrl.u32 2131351028, %v564
    %v571 = vor.u32 %v569, %v570
    %v572 = vshll.u32 2131351028, %v563
    %v573 = vshrl.u32 2102212464, %v564
    %v574 = vor.u32 %v572, %v573
    %v575 = vshll.u32 2102212464, %v563
    %v576 = vshrl.u32 920167782, %v564
    %v577 = vor.u32 %v575, %v576
    %v578 = vshll.u32 920167782, %v563
    %v579 = vshrl.u32 1326507024, %v564
    %v580 = vor.u32 %v578, %v579
    %vm581 = vcmp.lt.s32.totalorder %v562, 1
    %vm582 = vcmp.lt.s32.totalorder %v562, 2
    %vm583 = vcmp.lt.s32.totalorder %v562, 3
    %vm584 = vcmp.lt.s32.totalorder %v562, 4
    %v585 = vsel %vm581, %v565, %v568
    %v586 = vsel %vm584, %v574, 2102212464
    %v587 = vsel %vm583, %v571, %v586
    %v588 = vsel %vm582, %v585, %v587
    %v589 = vsel %vm581, %v568, %v571
    %v590 = vsel %vm584, %v577, 920167782
    %v591 = vsel %vm583, %v574, %v590
    %v592 = vsel %vm582, %v589, %v591
    %v593 = vsel %vm581, %v571, %v574
    %v594 = vsel %vm584, %v580, 1326507024
    %v595 = vsel %vm583, %v577, %v594
    %v596 = vsel %vm582, %v593, %v595
    %v597 = vshll.u32 %v557, 8
    %v598 = vmul.u32.u64.compose %v597, %v596
    %v599 = vextract.low.u32 %v598
    %v600 = vextract.high.u32 %v598
    %v601 = vmul.u32.u64.compose %v597, %v592
    %v602 = vextract.low.u32 %v601
    %v603 = vextract.high.u32 %v601
    %v604 = vmul.u32 %v597, %v588
    %v605 = vadd.s32 %v600, %v602
    %vm606 = vc.u32 %v600, %v602
    %v607 = vadd.s32 %v603, 1
    %v608 = vsel %vm606, %v607, %v603
    %v609 = vadd.s32 %v604, %v608
    %v610 = vadd.s32 %v609, 536870912
    %v611 = vshrl.u32 %v610, 30
    %v612 = vshll.u32 %v611, 30
    %v613 = vsub.s32 %v609, %v612
    %vm614 = vcmp.lt.s32.totalorder %v613, 0
    %v615 = vsub.s32 0, %v613
    %v616 = vsel %vm614, %v615, %v613
    %v617 = vclz %v616
    %v618 = vsub.s32 %v617, 2
    %vm619 = vcmp.gt.s32.totalorder 0, %v618
    %v620 = vsel %vm619, 0, %v618
    %v621 = vsub.s32 32, %v620
    %v622 = vshll.u32 %v613, %v620
    %v623 = vshrl.u32 %v605, %v621
    %v624 = vor.u32 %v622, %v623
    %v625 = vsub.s32 4294967266, %v620
    %v626 = vadd.s32 %v625, 127
    %v627 = vshll.u32 %v626, 23
    %v628 = vor.u32 4788187, %v627
    %v629 = vand.u32 2147483647, %v628
    %v631 = vcvt.s32.f32 %v624
    %v632 = vmul.f32 %v631, %v629
    %v633 = vxor.u32 %v632, 2147483648
    %v634 = vsel %vm551, %v633, %v632
    %v635 = vsub.s32 4, %v611
    %v636 = vsel %vm551, %v635, %v611
    %v637 = vsel %vm550, %v548, %v634
    %v638 = vsel %vm550, 0, %v636
    %v639 = vcosq.f32.pop %v637
    %v640 = vsinq.f32.pop %v637
    %vm641 = vweird.f32 %v548
    %v642 = vadd.s32 %v638, 3
    %v643 = vand.u32 %v642, 3
    %vm644 = vcmp.lt.s32.totalorder %v643, 2
    %vm645 = vcmp.eq.s32.totalorder %v643, 0
    %v646 = vxor.u32 %v640, 2147483648
    %v647 = vsel %vm645, %v639, %v646
    %vm648 = vcmp.eq.s32.totalorder %v643, 2
    %v649 = vxor.u32 %v639, 2147483648
    %v650 = vsel %vm648, %v649, %v640
    %v651 = vsel %vm644, %v647, %v650
    %v652 = vsel %vm641, nan, %v651
    %v653 = vlaneseq
    %v654 = vshrl.u32 %v653, 7
    %v655 = vsub.s32 0, %v654
    %v656 = vrot.slane %v538, %v655
    %v657 = vmul.f32 %v656, %v652
    %v658 = vadd.f32 %v535, %v657
    %v659 = vld [vmem:[#allocation5 + $0x5] sm:$0x1]
    %v660 = vld [vmem:[#allocation5 + $0xd] sm:$0x1]
    %v661 = vld [vmem:[#allocation5 + $0x15] sm:$0x1]
    %v662 = vlaneseq
    %v663 = vshrl.u32 %v662, 7
    %v664 = vsub.s32 0, %v663
    %v665 = vrot.slane %v659, %v664
    %v666 = vmul.f32 %v665, %v38
    %v667 = vlaneseq
    %v668 = vshrl.u32 %v667, 7
    %v669 = vsub.s32 0, %v668
    %v670 = vrot.slane %v660, %v669
    %v671 = vadd.f32 %v666, %v670
    %v672 = vand.u32 2147483647, %v671
    %vm673 = vcmp.le.f32.partialorder %v672, 0.7853982
    %vm674 = vcmp.lt.s32.totalorder %v671, 0
    %v675 = vand.u32 %v671, 2139095040
    %v676 = vshrl.u32 %v675, 23
    %v677 = vsub.s32 %v676, 127
    %v678 = vand.u32 2147483647, %v671
    %v679 = vand.u32 %v678, 8388607
    %v680 = vor.u32 %v679, 8388608
    %v681 = vsub.s32 0, %v680
    %v682 = vadd.s32 %v677, 1
    %vm683 = vcmp.gt.s32.totalorder %v682, 0
    %v684 = vsel %vm683, %v682, 0
    %v685 = vshrl.u32 %v684, 5
    %v686 = vand.u32 %v684, 31
    %v687 = vsub.s32 32, %v686
    %v688 = vshrl.u32 683565275, %v687
    %v689 = vshll.u32 683565275, %v686
    %v690 = vshrl.u32 2475754826, %v687
    %v691 = vor.u32 %v689, %v690
    %v692 = vshll.u32 2475754826, %v686
    %v693 = vshrl.u32 2131351028, %v687
    %v694 = vor.u32 %v692, %v693
    %v695 = vshll.u32 2131351028, %v686
    %v696 = vshrl.u32 2102212464, %v687
    %v697 = vor.u32 %v695, %v696
    %v698 = vshll.u32 2102212464, %v686
    %v699 = vshrl.u32 920167782, %v687
    %v700 = vor.u32 %v698, %v699
    %v701 = vshll.u32 920167782, %v686
    %v702 = vshrl.u32 1326507024, %v687
    %v703 = vor.u32 %v701, %v702
    %vm704 = vcmp.lt.s32.totalorder %v685, 1
    %vm705 = vcmp.lt.s32.totalorder %v685, 2
    %vm706 = vcmp.lt.s32.totalorder %v685, 3
    %vm707 = vcmp.lt.s32.totalorder %v685, 4
    %v708 = vsel %vm704, %v688, %v691
    %v709 = vsel %vm707, %v697, 2102212464
    %v710 = vsel %vm706, %v694, %v709
    %v711 = vsel %vm705, %v708, %v710
    %v712 = vsel %vm704, %v691, %v694
    %v713 = vsel %vm707, %v700, 920167782
    %v714 = vsel %vm706, %v697, %v713
    %v715 = vsel %vm705, %v712, %v714
    %v716 = vsel %vm704, %v694, %v697
    %v717 = vsel %vm707, %v703, 1326507024
    %v718 = vsel %vm706, %v700, %v717
    %v719 = vsel %vm705, %v716, %v718
    %v720 = vshll.u32 %v680, 8
    %v721 = vmul.u32.u64.compose %v720, %v719
    %v722 = vextract.low.u32 %v721
    %v723 = vextract.high.u32 %v721
    %v724 = vmul.u32.u64.compose %v720, %v715
    %v725 = vextract.low.u32 %v724
    %v726 = vextract.high.u32 %v724
    %v727 = vmul.u32 %v720, %v711
    %v728 = vadd.s32 %v723, %v725
    %vm729 = vc.u32 %v723, %v725
    %v730 = vadd.s32 %v726, 1
    %v731 = vsel %vm729, %v730, %v726
    %v732 = vadd.s32 %v727, %v731
    %v733 = vadd.s32 %v732, 536870912
    %v734 = vshrl.u32 %v733, 30
    %v735 = vshll.u32 %v734, 30
    %v736 = vsub.s32 %v732, %v735
    %vm737 = vcmp.lt.s32.totalorder %v736, 0
    %v738 = vsub.s32 0, %v736
    %v739 = vsel %vm737, %v738, %v736
    %v740 = vclz %v739
    %v741 = vsub.s32 %v740, 2
    %vm742 = vcmp.gt.s32.totalorder 0, %v741
    %v743 = vsel %vm742, 0, %v741
    %v744 = vsub.s32 32, %v743
    %v745 = vshll.u32 %v736, %v743
    %v746 = vshrl.u32 %v728, %v744
    %v747 = vor.u32 %v745, %v746
    %v748 = vsub.s32 4294967266, %v743
    %v749 = vadd.s32 %v748, 127
    %v750 = vshll.u32 %v749, 23
    %v751 = vor.u32 4788187, %v750
    %v752 = vand.u32 2147483647, %v751
    %v754 = vcvt.s32.f32 %v747
    %v755 = vmul.f32 %v754, %v752
    %v756 = vxor.u32 %v755, 2147483648
    %v757 = vsel %vm674, %v756, %v755
    %v758 = vsub.s32 4, %v734
    %v759 = vsel %vm674, %v758, %v734
    %v760 = vsel %vm673, %v671, %v757
    %v761 = vsel %vm673, 0, %v759
    %v762 = vcosq.f32.pop %v760
    %v763 = vsinq.f32.pop %v760
    %vm764 = vweird.f32 %v671
    %v765 = vadd.s32 %v761, 3
    %v766 = vand.u32 %v765, 3
    %vm767 = vcmp.lt.s32.totalorder %v766, 2
    %vm768 = vcmp.eq.s32.totalorder %v766, 0
    %v769 = vxor.u32 %v763, 2147483648
    %v770 = vsel %vm768, %v762, %v769
    %vm771 = vcmp.eq.s32.totalorder %v766, 2
    %v772 = vxor.u32 %v762, 2147483648
    %v773 = vsel %vm771, %v772, %v763
    %v774 = vsel %vm767, %v770, %v773
    %v775 = vsel %vm764, nan, %v774
    %v776 = vlaneseq
    %v777 = vshrl.u32 %v776, 7
    %v778 = vsub.s32 0, %v777
    %v779 = vrot.slane %v661, %v778
    %v780 = vmul.f32 %v779, %v775
    %v781 = vadd.f32 %v658, %v780
    %v782 = vld [vmem:[#allocation5 + $0x6] sm:$0x1]
    %v783 = vld [vmem:[#allocation5 + $0xe] sm:$0x1]
    %v784 = vld [vmem:[#allocation5 + $0x16] sm:$0x1]
    %v785 = vlaneseq
    %v786 = vshrl.u32 %v785, 7
    %v787 = vsub.s32 0, %v786
    %v788 = vrot.slane %v782, %v787
    %v789 = vmul.f32 %v788, %v38
    %v790 = vlaneseq
    %v791 = vshrl.u32 %v790, 7
    %v792 = vsub.s32 0, %v791
    %v793 = vrot.slane %v783, %v792
    %v794 = vadd.f32 %v789, %v793
    %v795 = vand.u32 2147483647, %v794
    %vm796 = vcmp.le.f32.partialorder %v795, 0.7853982
    %vm797 = vcmp.lt.s32.totalorder %v794, 0
    %v798 = vand.u32 %v794, 2139095040
    %v799 = vshrl.u32 %v798, 23
    %v800 = vsub.s32 %v799, 127
    %v801 = vand.u32 2147483647, %v794
    %v802 = vand.u32 %v801, 8388607
    %v803 = vor.u32 %v802, 8388608
    %v804 = vsub.s32 0, %v803
    %v805 = vadd.s32 %v800, 1
    %vm806 = vcmp.gt.s32.totalorder %v805, 0
    %v807 = vsel %vm806, %v805, 0
    %v808 = vshrl.u32 %v807, 5
    %v809 = vand.u32 %v807, 31
    %v810 = vsub.s32 32, %v809
    %v811 = vshrl.u32 683565275, %v810
    %v812 = vshll.u32 683565275, %v809
    %v813 = vshrl.u32 2475754826, %v810
    %v814 = vor.u32 %v812, %v813
    %v815 = vshll.u32 2475754826, %v809
    %v816 = vshrl.u32 2131351028, %v810
    %v817 = vor.u32 %v815, %v816
    %v818 = vshll.u32 2131351028, %v809
    %v819 = vshrl.u32 2102212464, %v810
    %v820 = vor.u32 %v818, %v819
    %v821 = vshll.u32 2102212464, %v809
    %v822 = vshrl.u32 920167782, %v810
    %v823 = vor.u32 %v821, %v822
    %v824 = vshll.u32 920167782, %v809
    %v825 = vshrl.u32 1326507024, %v810
    %v826 = vor.u32 %v824, %v825
    %vm827 = vcmp.lt.s32.totalorder %v808, 1
    %vm828 = vcmp.lt.s32.totalorder %v808, 2
    %vm829 = vcmp.lt.s32.totalorder %v808, 3
    %vm830 = vcmp.lt.s32.totalorder %v808, 4
    %v831 = vsel %vm827, %v811, %v814
    %v832 = vsel %vm830, %v820, 2102212464
    %v833 = vsel %vm829, %v817, %v832
    %v834 = vsel %vm828, %v831, %v833
    %v835 = vsel %vm827, %v814, %v817
    %v836 = vsel %vm830, %v823, 920167782
    %v837 = vsel %vm829, %v820, %v836
    %v838 = vsel %vm828, %v835, %v837
    %v839 = vsel %vm827, %v817, %v820
    %v840 = vsel %vm830, %v826, 1326507024
    %v841 = vsel %vm829, %v823, %v840
    %v842 = vsel %vm828, %v839, %v841
    %v843 = vshll.u32 %v803, 8
    %v844 = vmul.u32.u64.compose %v843, %v842
    %v845 = vextract.low.u32 %v844
    %v846 = vextract.high.u32 %v844
    %v847 = vmul.u32.u64.compose %v843, %v838
    %v848 = vextract.low.u32 %v847
    %v849 = vextract.high.u32 %v847
    %v850 = vmul.u32 %v843, %v834
    %v851 = vadd.s32 %v846, %v848
    %vm852 = vc.u32 %v846, %v848
    %v853 = vadd.s32 %v849, 1
    %v854 = vsel %vm852, %v853, %v849
    %v855 = vadd.s32 %v850, %v854
    %v856 = vadd.s32 %v855, 536870912
    %v857 = vshrl.u32 %v856, 30
    %v858 = vshll.u32 %v857, 30
    %v859 = vsub.s32 %v855, %v858
    %vm860 = vcmp.lt.s32.totalorder %v859, 0
    %v861 = vsub.s32 0, %v859
    %v862 = vsel %vm860, %v861, %v859
    %v863 = vclz %v862
    %v864 = vsub.s32 %v863, 2
    %vm865 = vcmp.gt.s32.totalorder 0, %v864
    %v866 = vsel %vm865, 0, %v864
    %v867 = vsub.s32 32, %v866
    %v868 = vshll.u32 %v859, %v866
    %v869 = vshrl.u32 %v851, %v867
    %v870 = vor.u32 %v868, %v869
    %v871 = vsub.s32 4294967266, %v866
    %v872 = vadd.s32 %v871, 127
    %v873 = vshll.u32 %v872, 23
    %v874 = vor.u32 4788187, %v873
    %v875 = vand.u32 2147483647, %v874
    %v877 = vcvt.s32.f32 %v870
    %v878 = vmul.f32 %v877, %v875
    %v879 = vxor.u32 %v878, 2147483648
    %v880 = vsel %vm797, %v879, %v878
    %v881 = vsub.s32 4, %v857
    %v882 = vsel %vm797, %v881, %v857
    %v883 = vsel %vm796, %v794, %v880
    %v884 = vsel %vm796, 0, %v882
    %v885 = vcosq.f32.pop %v883
    %v886 = vsinq.f32.pop %v883
    %vm887 = vweird.f32 %v794
    %v888 = vadd.s32 %v884, 3
    %v889 = vand.u32 %v888, 3
    %vm890 = vcmp.lt.s32.totalorder %v889, 2
    %vm891 = vcmp.eq.s32.totalorder %v889, 0
    %v892 = vxor.u32 %v886, 2147483648
    %v893 = vsel %vm891, %v885, %v892
    %vm894 = vcmp.eq.s32.totalorder %v889, 2
    %v895 = vxor.u32 %v885, 2147483648
    %v896 = vsel %vm894, %v895, %v886
    %v897 = vsel %vm890, %v893, %v896
    %v898 = vsel %vm887, nan, %v897
    %v899 = vlaneseq
    %v900 = vshrl.u32 %v899, 7
    %v901 = vsub.s32 0, %v900
    %v902 = vrot.slane %v784, %v901
    %v903 = vmul.f32 %v902, %v898
    %v904 = vadd.f32 %v781, %v903
    %v905 = vld [vmem:[#allocation5 + $0x7] sm:$0x1]
    %v906 = vld [vmem:[#allocation5 + $0xf] sm:$0x1]
    %v907 = vld [vmem:[#allocation5 + $0x17] sm:$0x1]
    %v908 = vlaneseq
    %v909 = vshrl.u32 %v908, 7
    %v910 = vsub.s32 0, %v909
    %v911 = vrot.slane %v905, %v910
    %v912 = vmul.f32 %v911, %v38
    %v913 = vlaneseq
    %v914 = vshrl.u32 %v913, 7
    %v915 = vsub.s32 0, %v914
    %v916 = vrot.slane %v906, %v915
    %v917 = vadd.f32 %v912, %v916
    %v918 = vand.u32 2147483647, %v917
    %vm919 = vcmp.le.f32.partialorder %v918, 0.7853982
    %vm920 = vcmp.lt.s32.totalorder %v917, 0
    %v921 = vand.u32 %v917, 2139095040
    %v922 = vshrl.u32 %v921, 23
    %v923 = vsub.s32 %v922, 127
    %v924 = vand.u32 2147483647, %v917
    %v925 = vand.u32 %v924, 8388607
    %v926 = vor.u32 %v925, 8388608
    %v927 = vsub.s32 0, %v926
    %v928 = vadd.s32 %v923, 1
    %vm929 = vcmp.gt.s32.totalorder %v928, 0
    %v930 = vsel %vm929, %v928, 0
    %v931 = vshrl.u32 %v930, 5
    %v932 = vand.u32 %v930, 31
    %v933 = vsub.s32 32, %v932
    %v934 = vshrl.u32 683565275, %v933
    %v935 = vshll.u32 683565275, %v932
    %v936 = vshrl.u32 2475754826, %v933
    %v937 = vor.u32 %v935, %v936
    %v938 = vshll.u32 2475754826, %v932
    %v939 = vshrl.u32 2131351028, %v933
    %v940 = vor.u32 %v938, %v939
    %v941 = vshll.u32 2131351028, %v932
    %v942 = vshrl.u32 2102212464, %v933
    %v943 = vor.u32 %v941, %v942
    %v944 = vshll.u32 2102212464, %v932
    %v945 = vshrl.u32 920167782, %v933
    %v946 = vor.u32 %v944, %v945
    %v947 = vshll.u32 920167782, %v932
    %v948 = vshrl.u32 1326507024, %v933
    %v949 = vor.u32 %v947, %v948
    %vm950 = vcmp.lt.s32.totalorder %v931, 1
    %vm951 = vcmp.lt.s32.totalorder %v931, 2
    %vm952 = vcmp.lt.s32.totalorder %v931, 3
    %vm953 = vcmp.lt.s32.totalorder %v931, 4
    %v954 = vsel %vm950, %v934, %v937
    %v955 = vsel %vm953, %v943, 2102212464
    %v956 = vsel %vm952, %v940, %v955
    %v957 = vsel %vm951, %v954, %v956
    %v958 = vsel %vm950, %v937, %v940
    %v959 = vsel %vm953, %v946, 920167782
    %v960 = vsel %vm952, %v943, %v959
    %v961 = vsel %vm951, %v958, %v960
    %v962 = vsel %vm950, %v940, %v943
    %v963 = vsel %vm953, %v949, 1326507024
    %v964 = vsel %vm952, %v946, %v963
    %v965 = vsel %vm951, %v962, %v964
    %v966 = vshll.u32 %v926, 8
    %v967 = vmul.u32.u64.compose %v966, %v965
    %v968 = vextract.low.u32 %v967
    %v969 = vextract.high.u32 %v967
    %v970 = vmul.u32.u64.compose %v966, %v961
    %v971 = vextract.low.u32 %v970
    %v972 = vextract.high.u32 %v970
    %v973 = vmul.u32 %v966, %v957
    %v974 = vadd.s32 %v969, %v971
    %vm975 = vc.u32 %v969, %v971
    %v976 = vadd.s32 %v972, 1
    %v977 = vsel %vm975, %v976, %v972
    %v978 = vadd.s32 %v973, %v977
    %v979 = vadd.s32 %v978, 536870912
    %v980 = vshrl.u32 %v979, 30
    %v981 = vshll.u32 %v980, 30
    %v982 = vsub.s32 %v978, %v981
    %vm983 = vcmp.lt.s32.totalorder %v982, 0
    %v984 = vsub.s32 0, %v982
    %v985 = vsel %vm983, %v984, %v982
    %v986 = vclz %v985
    %v987 = vsub.s32 %v986, 2
    %vm988 = vcmp.gt.s32.totalorder 0, %v987
    %v989 = vsel %vm988, 0, %v987
    %v990 = vsub.s32 32, %v989
    %v991 = vshll.u32 %v982, %v989
    %v992 = vshrl.u32 %v974, %v990
    %v993 = vor.u32 %v991, %v992
    %v994 = vsub.s32 4294967266, %v989
    %v995 = vadd.s32 %v994, 127
    %v996 = vshll.u32 %v995, 23
    %v997 = vor.u32 4788187, %v996
    %v998 = vand.u32 2147483647, %v997
    %v1000 = vcvt.s32.f32 %v993
    %v1001 = vmul.f32 %v1000, %v998
    %v1002 = vxor.u32 %v1001, 2147483648
    %v1003 = vsel %vm920, %v1002, %v1001
    %v1004 = vsub.s32 4, %v980
    %v1005 = vsel %vm920, %v1004, %v980
    %v1006 = vsel %vm919, %v917, %v1003
    %v1007 = vsel %vm919, 0, %v1005
    %v1008 = vcosq.f32.pop %v1006
    %v1009 = vsinq.f32.pop %v1006
    %vm1010 = vweird.f32 %v917
    %v1011 = vadd.s32 %v1007, 3
    %v1012 = vand.u32 %v1011, 3
    %vm1013 = vcmp.lt.s32.totalorder %v1012, 2
    %vm1014 = vcmp.eq.s32.totalorder %v1012, 0
    %v1015 = vxor.u32 %v1009, 2147483648
    %v1016 = vsel %vm1014, %v1008, %v1015
    %vm1017 = vcmp.eq.s32.totalorder %v1012, 2
    %v1018 = vxor.u32 %v1008, 2147483648
    %v1019 = vsel %vm1017, %v1018, %v1009
    %v1020 = vsel %vm1013, %v1016, %v1019
    %v1021 = vsel %vm1010, nan, %v1020
    %v1022 = vlaneseq
    %v1023 = vshrl.u32 %v1022, 7
    %v1024 = vsub.s32 0, %v1023
    %v1025 = vrot.slane %v907, %v1024
    %v1026 = vmul.f32 %v1025, %v1021
    %v1027 = vadd.f32 %v904, %v1026
    %1028 = vst [vmem:[#allocation7] sm:$0x3] %v1027
    // Predicated region
    $region18: #{tpu_custom_call.1} parent=1 // pred_check
      _
    $region19: #{tpu_custom_call.1} parent=1 // pred_check_branch
      %1030 = sbr.rel (0) target = $region21
    $region20: #{tpu_custom_call.1} parent=1 // pred_region
      %s1032 = ssub.s32 32, 32
      %1033 = vsyncadd [#allocation4], %s1032
      %s1035 = sshll.u32 [#allocation7], 4
      %s1036 = int_to_ptr.vmem [resolvable:$true] %s1035
      %1038 = dma.vmem_to_hbm [thread:$0]  %s1036, 32, %s2, [#allocation4]
    $region21: #{tpu_custom_call.1} parent=1 // pred_fallthru
      _
    // Predicated region
    $region22: #{tpu_custom_call.1} parent=1 // pred_check
      _
    $region23: #{tpu_custom_call.1} parent=1 // pred_check_branch
      %1040 = sbr.rel (0) target = $region25
    $region24: #{tpu_custom_call.1} parent=1 // pred_region
      %1041 = dma.done [#allocation4], 32
    $region25: #{tpu_custom_call.1} parent=1 // pred_fallthru
      _
    %1042 = vsyncpa [#allocation3], 1
    %1043 = vsyncpa [#allocation6], 1
    %1044 = vsyncpa [#allocation4], 1

</llo_original>
